<compile_context>
chip_gen: v5e
topology: v5e:2x2
jax: 0.10.0
libtpu: 0.0.40
codegen_flags: <defaults>
</compile_context>

<pallas_src>
import functools
import math

import jax
import jax.numpy as jnp
from jax import lax
from jax.experimental import pallas as pl
from jax.experimental.pallas import tpu as pltpu


# --------------------------- fused Pallas kernel -----------------------------

def _dense_layer_kernel(x_ref, sin_ref, bin_ref, w1_ref, sh1_ref, dw_ref, pw_ref,
                        o_ref, ybuf, *, H, W, Cin, Cp, Cout, band, nb, d):
    """One (image n, output H-band b) step of the fused _DenseLayer forward.

    x_ref  : (H, W, Cin)        f32  whole input image (re-DMA'd only when n changes)
    sin/bin: (1, Cin)           f32  folded inference BN of _NormAct (scale / shift)
    w1_ref : (Cin, Cp)          bf16 1x1 conv weight, output-BN scale folded, Chid->Cp pad
    sh1_ref: (1, Cp)            f32  output BN shift (zero padded)
    dw_ref : (9, Cp)            f32  depthwise 3x3 weight, row = 3*dy + dx
    pw_ref : (Cp, Cout)         bf16 pointwise weight (zero-padded rows)
    o_ref  : (band, W, Cout)    f32  output band
    ybuf   : (band+2d, W+2d, Cp) f32 VMEM scratch: zero-padded bottleneck band
    """
    b = pl.program_id(1)

    # Zero the padded bottleneck band (row halo at image edges + W halo columns).
    ybuf[...] = jnp.zeros_like(ybuf)

    sin = sin_ref[...]          # (1, Cin)
    sft = bin_ref[...]          # (1, Cin)
    w1 = w1_ref[...]            # (Cin, Cp) bf16
    sh1 = sh1_ref[...]          # (1, Cp)

    def bneck(start, rows, dest):
        # BN+ReLU prologue (f32 VPU) -> 1x1 conv on the MXU -> +shift, ReLU -> VMEM.
        xb = x_ref[pl.ds(start, rows), :, :]                  # (rows, W, Cin) f32
        xb = xb.reshape(rows * W, Cin)                        # W % 8 == 0 -> no relayout
        xn = jnp.maximum(xb * sin + sft, 0.0)
        y = jnp.dot(xn.astype(jnp.bfloat16), w1,
                    preferred_element_type=jnp.float32)       # (rows*W, Cp)
        y = jnp.maximum(y + sh1, 0.0)
        ybuf[dest:dest + rows, d:d + W, :] = y.reshape(rows, W, Cp)

    # Bottleneck for the band + d-row halo, recomputed per band (stays in VMEM).
    if nb == 1:
        bneck(0, H, d)
    else:
        @pl.when(b == 0)
        def _():
            bneck(0, band + d, d)

        @pl.when(b == nb - 1)
        def _():
            bneck(H - band - d, band + d, 0)

        if nb > 2:
            @pl.when(jnp.logical_and(b > 0, b < nb - 1))
            def _():
                bneck(b * band - d, band + 2 * d, 0)

    # Depthwise 3x3 with dilation d (zero padding already materialized in ybuf).
    # Only 3 sublane-shifted slices (one per dx); dy slices are base-address changes.
    dwv = dw_ref[...]                                         # (9, Cp) f32
    acc = jnp.zeros((band, W, Cp), jnp.float32)
    for dx in range(3):
        xs = ybuf[:, dx * d:dx * d + W, :]                    # (band+2d, W, Cp)
        for dy in range(3):
            tap = dwv[3 * dy + dx:3 * dy + dx + 1, :]         # (1, Cp)
            acc = acc + xs[dy * d:dy * d + band] * tap

    # Pointwise 1x1 conv on the MXU; single bf16 rounding of the activation path.
    z = acc.reshape(band * W, Cp).astype(jnp.bfloat16)
    out = jnp.dot(z, pw_ref[...], preferred_element_type=jnp.float32)
    o_ref[...] = out.reshape(band, W, Cout).astype(o_ref.dtype)


# --------------------------- wrapper ------------------------------------------

def _round_up(v, m):
    return ((v + m - 1) // m) * m


def _pick_band(H, W, Cp, d, vmem_budget=8 << 20):
    """Largest divisor of H usable as an output row-band.

    Prefers >= 2 bands (both v7x TensorCores get work) while keeping the per-step f32
    working set (padded bottleneck band + depthwise accumulator) comfortably inside
    every generation's default scoped-VMEM limit (v5e: 16 MiB).
    """
    def ws_bytes(bnd):
        return ((bnd + 2 * d) * (W + 2 * d) + bnd * W) * Cp * 4

    best = None
    for bnd in sorted((v for v in range(1, H + 1) if H % v == 0), reverse=True):
        nb = H // bnd
        if nb >= 2 and bnd < d:          # interior/edge halo must fit inside a band
            continue
        if ws_bytes(bnd) > vmem_budget:
            continue
        if best is None:
            best = bnd
        if nb >= 2:
            return bnd
    return best if best is not None else H


def dense_layer_forward(kp, x, *, k=1, band=None):
    """_DenseLayer forward.  x: (N, H, W, Cin) NHWC f32.  Returns (N, H, W, growth) f32."""
    N, H, W, Cin = x.shape
    assert kp["w1"].shape[0] == Cin
    Cp = kp["w1"].shape[1]
    Cout = kp["pw"].shape[1]
    d = int(k)
    assert d >= 1

    if band is None:
        band = _pick_band(H, W, Cp, d)
    assert H % band == 0, (H, band)
    nb = H // band
    if nb >= 2:
        assert band >= d and band + d <= H, (band, d, H)

    x = x.astype(jnp.float32)   # kernel reads f32 directly (no XLA-side bf16 pre-cast pass)

    M = N * H * W
    flops = 2 * M * Cin * Cp + 2 * 9 * M * Cp + 2 * M * Cp * Cout
    bytes_accessed = (M * Cin * 4 + M * Cout * 4
                      + Cin * Cp * 2 + Cp * Cout * 2 + 9 * Cp * 4 + (2 * Cin + Cp) * 4)

    kern = functools.partial(
        _dense_layer_kernel,
        H=H, W=W, Cin=Cin, Cp=Cp, Cout=Cout, band=band, nb=nb, d=d)

    return pl.pallas_call(
        kern,
        out_shape=jax.ShapeDtypeStruct((N, H, W, Cout), jnp.float32),
        grid=(N, nb),
        in_specs=[
            pl.BlockSpec((None, H, W, Cin), lambda n, b: (n, 0, 0, 0)),  # x (per-image block)
            pl.BlockSpec((1, Cin), lambda n, b: (0, 0)),                 # _NormAct scale
            pl.BlockSpec((1, Cin), lambda n, b: (0, 0)),                 # _NormAct shift
            pl.BlockSpec((Cin, Cp), lambda n, b: (0, 0)),                # 1x1 conv weight (bf16)
            pl.BlockSpec((1, Cp), lambda n, b: (0, 0)),                  # bottleneck BN shift
            pl.BlockSpec((9, Cp), lambda n, b: (0, 0)),                  # depthwise weight (f32)
            pl.BlockSpec((Cp, Cout), lambda n, b: (0, 0)),               # pointwise weight (bf16)
        ],
        out_specs=pl.BlockSpec((None, band, W, Cout), lambda n, b: (n, b, 0, 0)),
        scratch_shapes=[pltpu.VMEM((band + 2 * d, W + 2 * d, Cp), jnp.float32)],
        compiler_params=pltpu.CompilerParams(
            dimension_semantics=("parallel", "parallel")),
        cost_estimate=pl.CostEstimate(
            flops=flops, transcendentals=0, bytes_accessed=bytes_accessed),
    )(x, kp["scale_in"], kp["shift_in"], kp["w1"], kp["shift1"], kp["dw"], kp["pw"])


# --------------------------- parameters --------------------------------------

def init_dense_layer_params(key, channels_in, growth_rate, bn_size):
    """f32 'module' parameters (He-init convs, non-trivial inference-mode BN)."""
    ch = bn_size * growth_rate
    ks = jax.random.split(key, 11)

    def folded_bn(k4, c, eps=1e-5):
        kg, kb, km, kv = k4[0], k4[1], k4[2], k4[3]
        gamma = 1.0 + 0.1 * jax.random.normal(kg, (c,), jnp.float32)
        beta = 0.1 * jax.random.normal(kb, (c,), jnp.float32)
        mean = 0.1 * jax.random.normal(km, (c,), jnp.float32)
        var = 1.0 + 0.5 * jax.random.uniform(kv, (c,), jnp.float32)
        scale = gamma / jnp.sqrt(var + eps)
        return scale, beta - mean * scale

    na_scale, na_shift = folded_bn(ks[0:4], channels_in)
    bn1_scale, bn1_shift = folded_bn(ks[4:8], ch)
    w1 = jax.random.normal(ks[8], (channels_in, ch), jnp.float32) * math.sqrt(2.0 / channels_in)
    dw = jax.random.normal(ks[9], (3, 3, ch), jnp.float32) * math.sqrt(2.0 / 9.0)
    pw = jax.random.normal(ks[10], (ch, growth_rate), jnp.float32) * math.sqrt(2.0 / ch)
    return dict(na_scale=na_scale, na_shift=na_shift, w1=w1,
                bn1_scale=bn1_scale, bn1_shift=bn1_shift, dw=dw, pw=pw)


def prepare_kernel_params(p):
    """Kernel-ready params: fold the bottleneck BN scale into the bf16 1x1 weight and
    zero-pad the hidden channel dim to a multiple of 128 (lane-dense intermediates)."""
    Cin, Chid = p["w1"].shape
    Cp = _round_up(Chid, 128)
    pad = Cp - Chid
    w1 = p["w1"] * p["bn1_scale"][None, :]
    w1 = jnp.pad(w1, ((0, 0), (0, pad))).astype(jnp.bfloat16)
    sh1 = jnp.pad(p["bn1_shift"], (0, pad)).reshape(1, Cp).astype(jnp.float32)
    dw = jnp.pad(p["dw"], ((0, 0), (0, 0), (0, pad))).reshape(9, Cp).astype(jnp.float32)
    pw = jnp.pad(p["pw"], ((0, pad), (0, 0))).astype(jnp.bfloat16)
    return dict(
        scale_in=p["na_scale"].reshape(1, -1).astype(jnp.float32),
        shift_in=p["na_shift"].reshape(1, -1).astype(jnp.float32),
        w1=w1, shift1=sh1, dw=dw, pw=pw)


# --------------------------- pure-JAX reference -------------------------------

def reference_forward(p, x, *, k=1):
    xn = jnp.maximum(x * p["na_scale"] + p["na_shift"], 0.0)
    y = jnp.einsum("nhwc,cd->nhwd", xn, p["w1"])
    y = jnp.maximum(y * p["bn1_scale"] + p["bn1_shift"], 0.0)
    chid = p["dw"].shape[-1]
    z = lax.conv_general_dilated(
        y, p["dw"].reshape(3, 3, 1, chid),
        window_strides=(1, 1), padding=((k, k), (k, k)), rhs_dilation=(k, k),
        dimension_numbers=("NHWC", "HWIO", "NHWC"),
        feature_group_count=chid)
    return jnp.einsum("nhwc,cd->nhwd", z, p["pw"])


# --------------------------- main ---------------------------------------------

if __name__ == "__main__":
    # small shapes consistent with the module
    channels_in, growth_rate, bn_size, drop_rate = 24, 8, 4, 0.0
    N, H, W = 2, 16, 16

    key = jax.random.PRNGKey(0)
    pkey, xkey = jax.random.split(key)
    params = init_dense_layer_params(pkey, channels_in, growth_rate, bn_size)
    kparams = prepare_kernel_params(params)

    # layout: NHWC; corresponds to a PyTorch NCHW input of shape (2, 24, 16, 16)
    x = jax.random.normal(xkey, (N, H, W, channels_in), jnp.float32)

    # (k, band): band=None -> heuristic (2 bands); band=4 exercises the interior-band
    # (dynamic-offset halo) path; k=2 exercises the dilated stencil.
    for k, band in ((1, None), (1, 4), (2, None)):
        fwd = jax.jit(functools.partial(dense_layer_forward, kparams, k=k, band=band))
        out = fwd(x)
        jax.block_until_ready(out)

        assert out.shape == (N, H, W, growth_rate), out.shape
        assert bool(jnp.all(jnp.isfinite(out)))

        ref = reference_forward(params, x, k=k)
        err = float(jnp.max(jnp.abs(out - ref)))
        scale = float(jnp.max(jnp.abs(ref))) + 1e-6
        assert err < 0.1 * scale + 1e-3, (k, band, err, scale)

    print("KERNEL_OK")
</pallas_src>

<mosaic_0001>
module attributes {stable_mosaic.version = 11 : i64} {
  func.func @_dense_layer_kernel(%arg0: i32, %arg1: i32, %arg2: memref<1x16x16x24xf32, #tpu.memory_space<vmem>>, %arg3: memref<1x24xf32, #tpu.memory_space<vmem>>, %arg4: memref<1x24xf32, #tpu.memory_space<vmem>>, %arg5: memref<24x128xbf16, #tpu.memory_space<vmem>>, %arg6: memref<1x128xf32, #tpu.memory_space<vmem>>, %arg7: memref<9x128xf32, #tpu.memory_space<vmem>>, %arg8: memref<128x8xbf16, #tpu.memory_space<vmem>>, %arg9: memref<1x8x16x8xf32, #tpu.memory_space<vmem>>, %arg10: memref<10x18x128xf32, #tpu.memory_space<vmem>>) attributes {dimension_semantics = [#tpu.dimension_semantics<parallel>, #tpu.dimension_semantics<parallel>], iteration_bounds = array<i64: 2, 2>, scalar_prefetch = 0 : i64, scratch_operands = 1 : i64, tpu.core_type = #tpu.core_type<tc>, window_params = [{transform_indices = @transform_0, window_bounds = array<i64: 1, 16, 16, 24>}, {pipeline_mode = #tpu.pipeline_mode<synchronous>, transform_indices = @transform_1, window_bounds = array<i64: 1, 24>}, {pipeline_mode = #tpu.pipeline_mode<synchronous>, transform_indices = @transform_2, window_bounds = array<i64: 1, 24>}, {pipeline_mode = #tpu.pipeline_mode<synchronous>, transform_indices = @transform_3, window_bounds = array<i64: 24, 128>}, {pipeline_mode = #tpu.pipeline_mode<synchronous>, transform_indices = @transform_4, window_bounds = array<i64: 1, 128>}, {pipeline_mode = #tpu.pipeline_mode<synchronous>, transform_indices = @transform_5, window_bounds = array<i64: 9, 128>}, {pipeline_mode = #tpu.pipeline_mode<synchronous>, transform_indices = @transform_6, window_bounds = array<i64: 128, 8>}, {transform_indices = @transform_7, window_bounds = array<i64: 1, 8, 16, 8>}]} {
    %cst = arith.constant 0.000000e+00 : f32
    %0 = vector.broadcast %cst : f32 to vector<10x18x128xf32>
    %c0 = arith.constant 0 : index
    %c0_0 = arith.constant 0 : index
    %c0_1 = arith.constant 0 : index
    %1 = vector.load %arg10[%c0, %c0_0, %c0_1] : memref<10x18x128xf32, #tpu.memory_space<vmem>>, vector<10x18x128xf32>
    tpu.vector_store %arg10[%c0, %c0_0, %c0_1], %0 {strides = array<i32>} : memref<10x18x128xf32, #tpu.memory_space<vmem>>, vector<10x18x128xf32>,
    %c0_2 = arith.constant 0 : index
    %c0_3 = arith.constant 0 : index
    %2 = vector.load %arg3[%c0_2, %c0_3] : memref<1x24xf32, #tpu.memory_space<vmem>>, vector<1x24xf32>
    %c0_4 = arith.constant 0 : index
    %c0_5 = arith.constant 0 : index
    %3 = vector.load %arg4[%c0_4, %c0_5] : memref<1x24xf32, #tpu.memory_space<vmem>>, vector<1x24xf32>
    %c0_6 = arith.constant 0 : index
    %c0_7 = arith.constant 0 : index
    %4 = vector.load %arg5[%c0_6, %c0_7] : memref<24x128xbf16, #tpu.memory_space<vmem>>, vector<24x128xbf16>
    %c0_8 = arith.constant 0 : index
    %c0_9 = arith.constant 0 : index
    %5 = vector.load %arg6[%c0_8, %c0_9] : memref<1x128xf32, #tpu.memory_space<vmem>>, vector<1x128xf32>
    %c0_i32 = arith.constant 0 : i32
    %6 = arith.cmpi eq, %arg1, %c0_i32 : i32
    %7 = arith.extui %6 : i1 to i32
    %c0_i32_10 = arith.constant 0 : i32
    %8 = arith.cmpi ne, %7, %c0_i32_10 : i32
    scf.if %8 {
      %c0_29 = arith.constant 0 : index
      %c0_30 = arith.constant 0 : index
      %c0_31 = arith.constant 0 : index
      %c0_32 = arith.constant 0 : index
      %79 = vector.load %arg2[%c0_29, %c0_30, %c0_31, %c0_32] : memref<1x16x16x24xf32, #tpu.memory_space<vmem>>, vector<1x9x16x24xf32>
      %80 = vector.shape_cast %79 : vector<1x9x16x24xf32> to vector<9x16x24xf32>
      %81 = vector.shape_cast %80 : vector<9x16x24xf32> to vector<144x24xf32>
      %82 = vector.broadcast %2 : vector<1x24xf32> to vector<144x24xf32>
      %83 = arith.mulf %81, %82 : vector<144x24xf32>
      %84 = vector.broadcast %3 : vector<1x24xf32> to vector<144x24xf32>
      %85 = arith.addf %83, %84 : vector<144x24xf32>
      %cst_33 = arith.constant 0.000000e+00 : f32
      %86 = vector.broadcast %cst_33 : f32 to vector<144x24xf32>
      %87 = arith.maximumf %85, %86 : vector<144x24xf32>
      %88 = arith.truncf %87 : vector<144x24xf32> to vector<144x24xbf16>
      %cst_34 = arith.constant dense<0.000000e+00> : vector<144x128xf32>
      %89 = tpu.matmul %88, %4, %cst_34 {dimension_numbers = #tpu.dot_dimension_numbers<[1], [0], [0], [1], [0, 0, 1, 1], [], []>} : vector<144x24xbf16>, vector<24x128xbf16>, vector<144x128xf32> -> vector<144x128xf32>
      %90 = vector.broadcast %5 : vector<1x128xf32> to vector<144x128xf32>
      %91 = arith.addf %89, %90 : vector<144x128xf32>
      %cst_35 = arith.constant 0.000000e+00 : f32
      %92 = vector.broadcast %cst_35 : f32 to vector<144x128xf32>
      %93 = arith.maximumf %91, %92 : vector<144x128xf32>
      %94 = vector.shape_cast %93 : vector<144x128xf32> to vector<9x16x128xf32>
      %c1_36 = arith.constant 1 : index
      %c1_37 = arith.constant 1 : index
      %c0_38 = arith.constant 0 : index
      %95 = vector.load %arg10[%c1_36, %c1_37, %c0_38] : memref<10x18x128xf32, #tpu.memory_space<vmem>>, vector<9x16x128xf32>
      tpu.vector_store %arg10[%c1_36, %c1_37, %c0_38], %94 {strides = array<i32>} : memref<10x18x128xf32, #tpu.memory_space<vmem>>, vector<9x16x128xf32>,
    } else {
    }
    %c1_i32 = arith.constant 1 : i32
    %9 = arith.cmpi eq, %arg1, %c1_i32 : i32
    %10 = arith.extui %9 : i1 to i32
    %c0_i32_11 = arith.constant 0 : i32
    %11 = arith.cmpi ne, %10, %c0_i32_11 : i32
    scf.if %11 {
      %c0_29 = arith.constant 0 : index
      %c7 = arith.constant 7 : index
      %c0_30 = arith.constant 0 : index
      %c0_31 = arith.constant 0 : index
      %79 = vector.load %arg2[%c0_29, %c7, %c0_30, %c0_31] : memref<1x16x16x24xf32, #tpu.memory_space<vmem>>, vector<1x9x16x24xf32>
      %80 = vector.shape_cast %79 : vector<1x9x16x24xf32> to vector<9x16x24xf32>
      %81 = vector.shape_cast %80 : vector<9x16x24xf32> to vector<144x24xf32>
      %82 = vector.broadcast %2 : vector<1x24xf32> to vector<144x24xf32>
      %83 = arith.mulf %81, %82 : vector<144x24xf32>
      %84 = vector.broadcast %3 : vector<1x24xf32> to vector<144x24xf32>
      %85 = arith.addf %83, %84 : vector<144x24xf32>
      %cst_32 = arith.constant 0.000000e+00 : f32
      %86 = vector.broadcast %cst_32 : f32 to vector<144x24xf32>
      %87 = arith.maximumf %85, %86 : vector<144x24xf32>
      %88 = arith.truncf %87 : vector<144x24xf32> to vector<144x24xbf16>
      %cst_33 = arith.constant dense<0.000000e+00> : vector<144x128xf32>
      %89 = tpu.matmul %88, %4, %cst_33 {dimension_numbers = #tpu.dot_dimension_numbers<[1], [0], [0], [1], [0, 0, 1, 1], [], []>} : vector<144x24xbf16>, vector<24x128xbf16>, vector<144x128xf32> -> vector<144x128xf32>
      %90 = vector.broadcast %5 : vector<1x128xf32> to vector<144x128xf32>
      %91 = arith.addf %89, %90 : vector<144x128xf32>
      %cst_34 = arith.constant 0.000000e+00 : f32
      %92 = vector.broadcast %cst_34 : f32 to vector<144x128xf32>
      %93 = arith.maximumf %91, %92 : vector<144x128xf32>
      %94 = vector.shape_cast %93 : vector<144x128xf32> to vector<9x16x128xf32>
      %c0_35 = arith.constant 0 : index
      %c1_36 = arith.constant 1 : index
      %c0_37 = arith.constant 0 : index
      %95 = vector.load %arg10[%c0_35, %c1_36, %c0_37] : memref<10x18x128xf32, #tpu.memory_space<vmem>>, vector<9x16x128xf32>
      tpu.vector_store %arg10[%c0_35, %c1_36, %c0_37], %94 {strides = array<i32>} : memref<10x18x128xf32, #tpu.memory_space<vmem>>, vector<9x16x128xf32>,
    } else {
    }
    %c0_12 = arith.constant 0 : index
    %c0_13 = arith.constant 0 : index
    %12 = vector.load %arg7[%c0_12, %c0_13] : memref<9x128xf32, #tpu.memory_space<vmem>>, vector<9x128xf32>
    %cst_14 = arith.constant 0.000000e+00 : f32
    %13 = vector.broadcast %cst_14 : f32 to vector<8x16x128xf32>
    %c0_15 = arith.constant 0 : index
    %c0_16 = arith.constant 0 : index
    %c0_17 = arith.constant 0 : index
    %14 = vector.load %arg10[%c0_15, %c0_16, %c0_17] : memref<10x18x128xf32, #tpu.memory_space<vmem>>, vector<10x16x128xf32>
    %15 = vector.extract_strided_slice %12 {offsets = [0, 0], sizes = [1, 128], strides = [1, 1]} : vector<9x128xf32> to vector<1x128xf32>
    %16 = vector.extract_strided_slice %14 {offsets = [0, 0, 0], sizes = [8, 16, 128], strides = [1, 1, 1]} : vector<10x16x128xf32> to vector<8x16x128xf32>
    %17 = vector.shape_cast %15 : vector<1x128xf32> to vector<1x1x128xf32>
    %18 = vector.broadcast %17 : vector<1x1x128xf32> to vector<8x16x128xf32>
    %19 = arith.mulf %16, %18 : vector<8x16x128xf32>
    %20 = arith.addf %13, %19 : vector<8x16x128xf32>
    %21 = vector.extract_strided_slice %12 {offsets = [3, 0], sizes = [1, 128], strides = [1, 1]} : vector<9x128xf32> to vector<1x128xf32>
    %22 = vector.extract_strided_slice %14 {offsets = [1, 0, 0], sizes = [8, 16, 128], strides = [1, 1, 1]} : vector<10x16x128xf32> to vector<8x16x128xf32>
    %23 = vector.shape_cast %21 : vector<1x128xf32> to vector<1x1x128xf32>
    %24 = vector.broadcast %23 : vector<1x1x128xf32> to vector<8x16x128xf32>
    %25 = arith.mulf %22, %24 : vector<8x16x128xf32>
    %26 = arith.addf %20, %25 : vector<8x16x128xf32>
    %27 = vector.extract_strided_slice %12 {offsets = [6, 0], sizes = [1, 128], strides = [1, 1]} : vector<9x128xf32> to vector<1x128xf32>
    %28 = vector.extract_strided_slice %14 {offsets = [2, 0, 0], sizes = [8, 16, 128], strides = [1, 1, 1]} : vector<10x16x128xf32> to vector<8x16x128xf32>
    %29 = vector.shape_cast %27 : vector<1x128xf32> to vector<1x1x128xf32>
    %30 = vector.broadcast %29 : vector<1x1x128xf32> to vector<8x16x128xf32>
    %31 = arith.mulf %28, %30 : vector<8x16x128xf32>
    %32 = arith.addf %26, %31 : vector<8x16x128xf32>
    %c0_18 = arith.constant 0 : index
    %c1 = arith.constant 1 : index
    %c0_19 = arith.constant 0 : index
    %33 = vector.load %arg10[%c0_18, %c1, %c0_19] : memref<10x18x128xf32, #tpu.memory_space<vmem>>, vector<10x16x128xf32>
    %34 = vector.extract_strided_slice %12 {offsets = [1, 0], sizes = [1, 128], strides = [1, 1]} : vector<9x128xf32> to vector<1x128xf32>
    %35 = vector.extract_strided_slice %33 {offsets = [0, 0, 0], sizes = [8, 16, 128], strides = [1, 1, 1]} : vector<10x16x128xf32> to vector<8x16x128xf32>
    %36 = vector.shape_cast %34 : vector<1x128xf32> to vector<1x1x128xf32>
    %37 = vector.broadcast %36 : vector<1x1x128xf32> to vector<8x16x128xf32>
    %38 = arith.mulf %35, %37 : vector<8x16x128xf32>
    %39 = arith.addf %32, %38 : vector<8x16x128xf32>
    %40 = vector.extract_strided_slice %12 {offsets = [4, 0], sizes = [1, 128], strides = [1, 1]} : vector<9x128xf32> to vector<1x128xf32>
    %41 = vector.extract_strided_slice %33 {offsets = [1, 0, 0], sizes = [8, 16, 128], strides = [1, 1, 1]} : vector<10x16x128xf32> to vector<8x16x128xf32>
    %42 = vector.shape_cast %40 : vector<1x128xf32> to vector<1x1x128xf32>
    %43 = vector.broadcast %42 : vector<1x1x128xf32> to vector<8x16x128xf32>
    %44 = arith.mulf %41, %43 : vector<8x16x128xf32>
    %45 = arith.addf %39, %44 : vector<8x16x128xf32>
    %46 = vector.extract_strided_slice %12 {offsets = [7, 0], sizes = [1, 128], strides = [1, 1]} : vector<9x128xf32> to vector<1x128xf32>
    %47 = vector.extract_strided_slice %33 {offsets = [2, 0, 0], sizes = [8, 16, 128], strides = [1, 1, 1]} : vector<10x16x128xf32> to vector<8x16x128xf32>
    %48 = vector.shape_cast %46 : vector<1x128xf32> to vector<1x1x128xf32>
    %49 = vector.broadcast %48 : vector<1x1x128xf32> to vector<8x16x128xf32>
    %50 = arith.mulf %47, %49 : vector<8x16x128xf32>
    %51 = arith.addf %45, %50 : vector<8x16x128xf32>
    %c0_20 = arith.constant 0 : index
    %c2 = arith.constant 2 : index
    %c0_21 = arith.constant 0 : index
    %52 = vector.load %arg10[%c0_20, %c2, %c0_21] : memref<10x18x128xf32, #tpu.memory_space<vmem>>, vector<10x16x128xf32>
    %53 = vector.extract_strided_slice %12 {offsets = [2, 0], sizes = [1, 128], strides = [1, 1]} : vector<9x128xf32> to vector<1x128xf32>
    %54 = vector.extract_strided_slice %52 {offsets = [0, 0, 0], sizes = [8, 16, 128], strides = [1, 1, 1]} : vector<10x16x128xf32> to vector<8x16x128xf32>
    %55 = vector.shape_cast %53 : vector<1x128xf32> to vector<1x1x128xf32>
    %56 = vector.broadcast %55 : vector<1x1x128xf32> to vector<8x16x128xf32>
    %57 = arith.mulf %54, %56 : vector<8x16x128xf32>
    %58 = arith.addf %51, %57 : vector<8x16x128xf32>
    %59 = vector.extract_strided_slice %12 {offsets = [5, 0], sizes = [1, 128], strides = [1, 1]} : vector<9x128xf32> to vector<1x128xf32>
    %60 = vector.extract_strided_slice %52 {offsets = [1, 0, 0], sizes = [8, 16, 128], strides = [1, 1, 1]} : vector<10x16x128xf32> to vector<8x16x128xf32>
    %61 = vector.shape_cast %59 : vector<1x128xf32> to vector<1x1x128xf32>
    %62 = vector.broadcast %61 : vector<1x1x128xf32> to vector<8x16x128xf32>
    %63 = arith.mulf %60, %62 : vector<8x16x128xf32>
    %64 = arith.addf %58, %63 : vector<8x16x128xf32>
    %65 = vector.extract_strided_slice %12 {offsets = [8, 0], sizes = [1, 128], strides = [1, 1]} : vector<9x128xf32> to vector<1x128xf32>
    %66 = vector.extract_strided_slice %52 {offsets = [2, 0, 0], sizes = [8, 16, 128], strides = [1, 1, 1]} : vector<10x16x128xf32> to vector<8x16x128xf32>
    %67 = vector.shape_cast %65 : vector<1x128xf32> to vector<1x1x128xf32>
    %68 = vector.broadcast %67 : vector<1x1x128xf32> to vector<8x16x128xf32>
    %69 = arith.mulf %66, %68 : vector<8x16x128xf32>
    %70 = arith.addf %64, %69 : vector<8x16x128xf32>
    %71 = vector.shape_cast %70 : vector<8x16x128xf32> to vector<128x128xf32>
    %72 = arith.truncf %71 : vector<128x128xf32> to vector<128x128xbf16>
    %c0_22 = arith.constant 0 : index
    %c0_23 = arith.constant 0 : index
    %73 = vector.load %arg8[%c0_22, %c0_23] : memref<128x8xbf16, #tpu.memory_space<vmem>>, vector<128x8xbf16>
    %cst_24 = arith.constant dense<0.000000e+00> : vector<128x8xf32>
    %74 = tpu.matmul %72, %73, %cst_24 {dimension_numbers = #tpu.dot_dimension_numbers<[1], [0], [0], [1], [0, 0, 1, 1], [], []>} : vector<128x128xbf16>, vector<128x8xbf16>, vector<128x8xf32> -> vector<128x8xf32>
    %75 = vector.shape_cast %74 : vector<128x8xf32> to vector<8x16x8xf32>
    %c0_25 = arith.constant 0 : index
    %c0_26 = arith.constant 0 : index
    %c0_27 = arith.constant 0 : index
    %c0_28 = arith.constant 0 : index
    %76 = vector.load %arg9[%c0_25, %c0_26, %c0_27, %c0_28] : memref<1x8x16x8xf32, #tpu.memory_space<vmem>>, vector<1x8x16x8xf32>
    %77 = vector.shape_cast %76 : vector<1x8x16x8xf32> to vector<8x16x8xf32>
    %78 = vector.shape_cast %75 : vector<8x16x8xf32> to vector<1x8x16x8xf32>
    tpu.vector_store %arg9[%c0_25, %c0_26, %c0_27, %c0_28], %78 {strides = array<i32>} : memref<1x8x16x8xf32, #tpu.memory_space<vmem>>, vector<1x8x16x8xf32>,
    return
  }
  func.func @transform_0(%arg0: i32, %arg1: i32) -> (i32, i32, i32, i32) {
    %c0_i32 = arith.constant 0 : i32
    %c0_i32_0 = arith.constant 0 : i32
    %c0_i32_1 = arith.constant 0 : i32
    %c0_i32_2 = arith.constant 0 : i32
    return %arg0, %c0_i32, %c0_i32_0, %c0_i32_1 : i32, i32, i32, i32
  }
  func.func @transform_1(%arg0: i32, %arg1: i32) -> (i32, i32) {
    %c0_i32 = arith.constant 0 : i32
    %c0_i32_0 = arith.constant 0 : i32
    %c0_i32_1 = arith.constant 0 : i32
    return %c0_i32, %c0_i32_0 : i32, i32
  }
  func.func @transform_2(%arg0: i32, %arg1: i32) -> (i32, i32) {
    %c0_i32 = arith.constant 0 : i32
    %c0_i32_0 = arith.constant 0 : i32
    %c0_i32_1 = arith.constant 0 : i32
    return %c0_i32, %c0_i32_0 : i32, i32
  }
  func.func @transform_3(%arg0: i32, %arg1: i32) -> (i32, i32) {
    %c0_i32 = arith.constant 0 : i32
    %c0_i32_0 = arith.constant 0 : i32
    %c0_i32_1 = arith.constant 0 : i32
    return %c0_i32, %c0_i32_0 : i32, i32
  }
  func.func @transform_4(%arg0: i32, %arg1: i32) -> (i32, i32) {
    %c0_i32 = arith.constant 0 : i32
    %c0_i32_0 = arith.constant 0 : i32
    %c0_i32_1 = arith.constant 0 : i32
    return %c0_i32, %c0_i32_0 : i32, i32
  }
  func.func @transform_5(%arg0: i32, %arg1: i32) -> (i32, i32) {
    %c0_i32 = arith.constant 0 : i32
    %c0_i32_0 = arith.constant 0 : i32
    %c0_i32_1 = arith.constant 0 : i32
    return %c0_i32, %c0_i32_0 : i32, i32
  }
  func.func @transform_6(%arg0: i32, %arg1: i32) -> (i32, i32) {
    %c0_i32 = arith.constant 0 : i32
    %c0_i32_0 = arith.constant 0 : i32
    %c0_i32_1 = arith.constant 0 : i32
    return %c0_i32, %c0_i32_0 : i32, i32
  }
  func.func @transform_7(%arg0: i32, %arg1: i32) -> (i32, i32, i32, i32) {
    %c0_i32 = arith.constant 0 : i32
    %c0_i32_0 = arith.constant 0 : i32
    %c0_i32_1 = arith.constant 0 : i32
    return %arg0, %arg1, %c0_i32, %c0_i32_0 : i32, i32, i32, i32
  }
}

</mosaic_0001>

<llo_original>
// kernel: dense_layer_forward.1
$region0: #{dense_layer_forward.1}
  #allocation0 [shape = 'u32[]', space=smem, size = 0x4, offset = 0x4, fixed_abs, tag = 'smem constant byte address 0x4 - core index']
  #allocation1 [shape = 'u32[72,128]{1,0:T(1,128)}', space=vmem, size = 0x9000, scoped, tag = 'internal scratch']
  #allocation2 [shape = 'f32[10,18,128]{2,1,0:T(8,128)}', space=vmem, size = 0x1e000, scoped, tag = 'scratch operand']
  %s0 = inlined_call_operand.hbm [shape: f32[2,16,16,24], index: 0, kind: input, shape index: {}]
  %s1 = inlined_call_operand.hbm [shape: f32[1,24], index: 1, kind: input, shape index: {}]
  %s2 = inlined_call_operand.hbm [shape: f32[1,24], index: 2, kind: input, shape index: {}]
  %s3 = inlined_call_operand.hbm [shape: bf16[24,128], index: 3, kind: input, shape index: {}]
  %s4 = inlined_call_operand.vmem [shape: f32[1,128], index: 4, kind: input, shape index: {}]
  %s5 = inlined_call_operand.hbm [shape: f32[9,128], index: 5, kind: input, shape index: {}]
  %s6 = inlined_call_operand.hbm [shape: bf16[128,8], index: 6, kind: input, shape index: {}]
  %s7 = inlined_call_operand.vmem [shape: f32[2,16,16,8], index: 7, kind: output, shape index: {}]
  %s8 = sld [smem:[#allocation0]]
  $region93: #{dense_layer_forward.1} parent=0
    _
  %s10 = ssub.s32 1, %s8
  %s11 = scalar_select 0, %s10, %s8
  $region1: #{dense_layer_forward.1} parent=0
    #allocation3 [shape = 'u8[262144]{0}', space=vmem, size = 0x40000, scoped, tag = 'input window, operand 0']
    #allocation4 [shape = 's32[2]{0}', space=sflag, size = 0x8, scoped, tag = 'scoped memory for dense_layer_forward.1']
    #allocation5 [shape = 'u8[512]{0}', space=vmem, size = 0x400, scoped, tag = 'input window, operand 1, single buffered']
    #allocation6 [shape = 's32[1]{0}', space=sflag, size = 0x4, scoped, tag = 'scoped memory for dense_layer_forward.1']
    #allocation7 [shape = 'u8[512]{0}', space=vmem, size = 0x400, scoped, tag = 'input window, operand 2, single buffered']
    #allocation8 [shape = 'u8[6144]{0}', space=vmem, size = 0x1800, scoped, tag = 'input window, operand 3, single buffered']
    #allocation9 [shape = 's32[1]{0}', space=sflag, size = 0x4, scoped, tag = 'scoped memory for dense_layer_forward.1']
    #allocation10 [shape = 'u8[8192]{0}', space=vmem, size = 0x2000, scoped, tag = 'input window, operand 5, single buffered']
    #allocation11 [shape = 'u8[32768]{0}', space=vmem, size = 0x8000, scoped, tag = 'input window, operand 6, single buffered']
    #allocation12 [shape = 's32[1]{0}', space=sflag, size = 0x4, scoped, tag = 'scoped memory for dense_layer_forward.1']
    %12 = vsyncpa [#allocation4], 0
    %s13 = scalar_lea.sflag [#allocation4], 1
    %14 = vsyncpa %s13, 0
    %15 = vsyncpa [#allocation6], 0
    %16 = vsyncpa [#allocation9], 0
    %17 = vsyncpa [#allocation12], 0
    loop: start=0, step=1, limit=6
    $region2: #{dense_layer_forward.1} parent=1 // loop_pre_header
      _
    $region3: #{dense_layer_forward.1} parent=1 // loop_header
      %s19 = sphi 0, %s23
      %p20 = scmp.ge.s32.totalorder %s19, 6
      %s26 = sphi 0, %s38
      %s27 = sphi 0, %s34
      %s28 = sphi 0, %s26
      %s29 = sphi 0, %s27
      %s30 = sphi 0, %s28
      %s31 = sphi 0, %s29
      %s41 = sphi 0, %s43
      %s44 = sphi 0, %s41
      %s45 = sphi 0, %s44
      %s61 = sphi 0, %s45
      %s65 = sphi 0, %s65
      %s67 = sphi 0, %s65
      %s68 = sphi 0, %s67
      %s82 = sphi 0, %s68
      %s86 = sphi 0, %s86
      %s88 = sphi 0, %s86
      %s89 = sphi 0, %s88
      %s103 = sphi 0, %s89
      %s107 = sphi 0, %s107
      %s109 = sphi 0, %s107
      %s110 = sphi 0, %s109
      %s124 = sphi 0, %s110
      %s128 = sphi 0, %s128
      %s130 = sphi 0, %s128
      %s131 = sphi 0, %s130
      %s145 = sphi 0, %s131
      %s149 = sphi 0, %s149
      %s151 = sphi 0, %s149
      %s152 = sphi 0, %s151
      %s166 = sphi 0, %s152
      %s170 = sphi 0, %s170
      %s172 = sphi 0, %s170
      %s173 = sphi 0, %s172
      %s187 = sphi 0, %s173
      %s195 = sphi 0, %s197
      %s198 = sphi 0, %s195
      %s199 = sphi 0, %s198
      %s215 = sphi 0, %s199
    $region4: #{dense_layer_forward.1} parent=1 // loop_header_branch
      %22 = sbr.rel (%p20) target = $region8
    $region5: #{dense_layer_forward.1} parent=1 // loop_body
      %s24 = ssub.s32 %s19, 1
      %s25 = ssub.s32 %s19, 2
      %s32 = sadd.s32 1, %s27
      %p33 = scmp.ge.s32.totalorder %s32, 2
      %s34 = scalar_select %p33, 0, %s32
      %s35 = sadd.s32 1, %s26
      %s36 = scalar_select %p33, %s35, %s26
      %p37 = scmp.ge.s32.totalorder %s36, 2
      %s38 = scalar_select %p37, 0, %s36
      %s39 = ssub.s32 %s26, %s38
      %p40 = scmp.eq.s32.totalorder %s39, 0
      %s42 = sadd.s32 %s41, 1
      %s43 = scalar_select %p40, %s41, %s42
      %p46 = pneg %p40
      %p47 = scmp.eq.s32.totalorder %s19, 3
      %p48 = por %p46, %p47
      %p49 = scmp.ne.s32.totalorder %s41, %s44
      %p50 = scmp.eq.s32.totalorder %s19, 0
      %p51 = por %p49, %p50
      %p52 = scmp.ne.s32.totalorder %s41, %s44
      %p53 = scmp.eq.s32.totalorder %s24, 3
      %p54 = por %p52, %p53
      %p55 = scmp.ne.s32.totalorder %s44, %s45
      %p56 = scmp.eq.s32.totalorder %s24, 0
      %p57 = por %p55, %p56
      %p58 = scmp.ne.s32.totalorder %s44, %s45
      %p59 = scmp.eq.s32.totalorder %s25, 3
      %p60 = por %p58, %p59
      %p62 = scmp.ne.s32.totalorder %s45, %s61
      %p63 = scmp.eq.s32.totalorder %s25, 0
      %p64 = por %p62, %p63
      %s66 = sadd.s32 %s65, 1
      %p69 = scmp.eq.s32.totalorder %s19, 3
      %p70 = scmp.ne.s32.totalorder %s65, %s67
      %p71 = scmp.eq.s32.totalorder %s19, 0
      %p72 = por %p70, %p71
      %p73 = scmp.ne.s32.totalorder %s65, %s67
      %p74 = scmp.eq.s32.totalorder %s24, 3
      %p75 = por %p73, %p74
      %p76 = scmp.ne.s32.totalorder %s67, %s68
      %p77 = scmp.eq.s32.totalorder %s24, 0
      %p78 = por %p76, %p77
      %p79 = scmp.ne.s32.totalorder %s67, %s68
      %p80 = scmp.eq.s32.totalorder %s25, 3
      %p81 = por %p79, %p80
      %p83 = scmp.ne.s32.totalorder %s68, %s82
      %p84 = scmp.eq.s32.totalorder %s25, 0
      %p85 = por %p83, %p84
      %s87 = sadd.s32 %s86, 1
      %p90 = scmp.eq.s32.totalorder %s19, 3
      %p91 = scmp.ne.s32.totalorder %s86, %s88
      %p92 = scmp.eq.s32.totalorder %s19, 0
      %p93 = por %p91, %p92
      %p94 = scmp.ne.s32.totalorder %s86, %s88
      %p95 = scmp.eq.s32.totalorder %s24, 3
      %p96 = por %p94, %p95
      %p97 = scmp.ne.s32.totalorder %s88, %s89
      %p98 = scmp.eq.s32.totalorder %s24, 0
      %p99 = por %p97, %p98
      %p100 = scmp.ne.s32.totalorder %s88, %s89
      %p101 = scmp.eq.s32.totalorder %s25, 3
      %p102 = por %p100, %p101
      %p104 = scmp.ne.s32.totalorder %s89, %s103
      %p105 = scmp.eq.s32.totalorder %s25, 0
      %p106 = por %p104, %p105
      %s108 = sadd.s32 %s107, 1
      %p111 = scmp.eq.s32.totalorder %s19, 3
      %p112 = scmp.ne.s32.totalorder %s107, %s109
      %p113 = scmp.eq.s32.totalorder %s19, 0
      %p114 = por %p112, %p113
      %p115 = scmp.ne.s32.totalorder %s107, %s109
      %p116 = scmp.eq.s32.totalorder %s24, 3
      %p117 = por %p115, %p116
      %p118 = scmp.ne.s32.totalorder %s109, %s110
      %p119 = scmp.eq.s32.totalorder %s24, 0
      %p120 = por %p118, %p119
      %p121 = scmp.ne.s32.totalorder %s109, %s110
      %p122 = scmp.eq.s32.totalorder %s25, 3
      %p123 = por %p121, %p122
      %p125 = scmp.ne.s32.totalorder %s110, %s124
      %p126 = scmp.eq.s32.totalorder %s25, 0
      %p127 = por %p125, %p126
      %s129 = sadd.s32 %s128, 1
      %p132 = scmp.eq.s32.totalorder %s19, 3
      %p133 = scmp.ne.s32.totalorder %s128, %s130
      %p134 = scmp.eq.s32.totalorder %s19, 0
      %p135 = por %p133, %p134
      %p136 = scmp.ne.s32.totalorder %s128, %s130
      %p137 = scmp.eq.s32.totalorder %s24, 3
      %p138 = por %p136, %p137
      %p139 = scmp.ne.s32.totalorder %s130, %s131
      %p140 = scmp.eq.s32.totalorder %s24, 0
      %p141 = por %p139, %p140
      %p142 = scmp.ne.s32.totalorder %s130, %s131
      %p143 = scmp.eq.s32.totalorder %s25, 3
      %p144 = por %p142, %p143
      %p146 = scmp.ne.s32.totalorder %s131, %s145
      %p147 = scmp.eq.s32.totalorder %s25, 0
      %p148 = por %p146, %p147
      %s150 = sadd.s32 %s149, 1
      %p153 = scmp.eq.s32.totalorder %s19, 3
      %p154 = scmp.ne.s32.totalorder %s149, %s151
      %p155 = scmp.eq.s32.totalorder %s19, 0
      %p156 = por %p154, %p155
      %p157 = scmp.ne.s32.totalorder %s149, %s151
      %p158 = scmp.eq.s32.totalorder %s24, 3
      %p159 = por %p157, %p158
      %p160 = scmp.ne.s32.totalorder %s151, %s152
      %p161 = scmp.eq.s32.totalorder %s24, 0
      %p162 = por %p160, %p161
      %p163 = scmp.ne.s32.totalorder %s151, %s152
      %p164 = scmp.eq.s32.totalorder %s25, 3
      %p165 = por %p163, %p164
      %p167 = scmp.ne.s32.totalorder %s152, %s166
      %p168 = scmp.eq.s32.totalorder %s25, 0
      %p169 = por %p167, %p168
      %s171 = sadd.s32 %s170, 1
      %p174 = scmp.eq.s32.totalorder %s19, 3
      %p175 = scmp.ne.s32.totalorder %s170, %s172
      %p176 = scmp.eq.s32.totalorder %s19, 0
      %p177 = por %p175, %p176
      %p178 = scmp.ne.s32.totalorder %s170, %s172
      %p179 = scmp.eq.s32.totalorder %s24, 3
      %p180 = por %p178, %p179
      %p181 = scmp.ne.s32.totalorder %s172, %s173
      %p182 = scmp.eq.s32.totalorder %s24, 0
      %p183 = por %p181, %p182
      %p184 = scmp.ne.s32.totalorder %s172, %s173
      %p185 = scmp.eq.s32.totalorder %s25, 3
      %p186 = por %p184, %p185
      %p188 = scmp.ne.s32.totalorder %s173, %s187
      %p189 = scmp.eq.s32.totalorder %s25, 0
      %p190 = por %p188, %p189
      %s191 = ssub.s32 %s26, %s38
      %s192 = ssub.s32 %s27, %s34
      %s193 = sor.u32 %s191, %s192
      %p194 = scmp.eq.s32.totalorder %s193, 0
      %s196 = sadd.s32 %s195, 1
      %s197 = scalar_select %p194, %s195, %s196
      %p200 = pneg %p194
      %p201 = scmp.eq.s32.totalorder %s19, 3
      %p202 = por %p200, %p201
      %p203 = scmp.ne.s32.totalorder %s195, %s198
      %p204 = scmp.eq.s32.totalorder %s19, 0
      %p205 = por %p203, %p204
      %p206 = scmp.ne.s32.totalorder %s195, %s198
      %p207 = scmp.eq.s32.totalorder %s24, 3
      %p208 = por %p206, %p207
      %p209 = scmp.ne.s32.totalorder %s198, %s199
      %p210 = scmp.eq.s32.totalorder %s24, 0
      %p211 = por %p209, %p210
      %p212 = scmp.ne.s32.totalorder %s198, %s199
      %p213 = scmp.eq.s32.totalorder %s25, 3
      %p214 = por %p212, %p213
      %p216 = scmp.ne.s32.totalorder %s199, %s215
      %p217 = scmp.eq.s32.totalorder %s25, 0
      %p218 = por %p216, %p217
      %p219 = scmp.le.s32.totalorder 1, %s19
      %p220 = scmp.lt.s32.totalorder %s19, 5
      %p221 = pnand %p219, %p220
      %p222 = pneg %p221
      // Predicated region
      $region9: #{dense_layer_forward.1} parent=5 // pred_check
        _
      $region10: #{dense_layer_forward.1} parent=5 // pred_check_branch
        %224 = sbr.rel (%p221) target = $region12
      $region11: #{dense_layer_forward.1} parent=5 // pred_region
        %s225 = ssub.s32 %s19, 1
        // Predicated region
        $region13: #{dense_layer_forward.1} parent=11 // pred_check
          %p226 = pneg %p78
        $region14: #{dense_layer_forward.1} parent=11 // pred_check_branch
          %228 = sbr.rel (%p226) target = $region16
        $region15: #{dense_layer_forward.1} parent=11 // pred_region
          %230 = vsyncadd [#allocation6], 0
          %s232 = sshll.u32 %s1, 4
          %s233 = int_to_ptr.hbm [resolvable:$true] %s232
          %s234 = sshll.u32 [#allocation5], 4
          %s235 = int_to_ptr.vmem [resolvable:$true] %s234
          %237 = dma.hbm_to_vmem [thread:$0]  %s233, 16, %s235, [#allocation6]
        $region16: #{dense_layer_forward.1} parent=11 // pred_fallthru
          _
        // Predicated region
        $region17: #{dense_layer_forward.1} parent=11 // pred_check
          %p238 = pneg %p99
        $region18: #{dense_layer_forward.1} parent=11 // pred_check_branch
          %240 = sbr.rel (%p238) target = $region20
        $region19: #{dense_layer_forward.1} parent=11 // pred_region
          %242 = vsyncadd [#allocation6], 0
          %s244 = sshll.u32 %s2, 4
          %s245 = int_to_ptr.hbm [resolvable:$true] %s244
          %s246 = sshll.u32 [#allocation7], 4
          %s247 = int_to_ptr.vmem [resolvable:$true] %s246
          %249 = dma.hbm_to_vmem [thread:$0]  %s245, 16, %s247, [#allocation6]
        $region20: #{dense_layer_forward.1} parent=11 // pred_fallthru
          _
        // Predicated region
        $region21: #{dense_layer_forward.1} parent=11 // pred_check
          %p250 = pneg %p120
        $region22: #{dense_layer_forward.1} parent=11 // pred_check_branch
          %252 = sbr.rel (%p250) target = $region24
        $region23: #{dense_layer_forward.1} parent=11 // pred_region
          %254 = vsyncadd [#allocation9], 0
          %s255 = sshll.u32 %s3, 4
          %s256 = int_to_ptr.hbm [resolvable:$true] %s255
          %s257 = sshll.u32 [#allocation8], 4
          %s258 = int_to_ptr.vmem [resolvable:$true] %s257
          %263 = dma.hbm_to_vmem [thread:$0]  %s256, 192, %s258, [#allocation9], 64, 64, 4
        $region24: #{dense_layer_forward.1} parent=11 // pred_fallthru
          _
        // Predicated region
        $region25: #{dense_layer_forward.1} parent=11 // pred_check
          %p264 = pneg %p141
        $region26: #{dense_layer_forward.1} parent=11 // pred_check_branch
          %266 = sbr.rel (%p264) target = $region28
        $region27: #{dense_layer_forward.1} parent=11 // pred_region
          _
        $region28: #{dense_layer_forward.1} parent=11 // pred_fallthru
          _
        // Predicated region
        $region29: #{dense_layer_forward.1} parent=11 // pred_check
          %p267 = pneg %p162
        $region30: #{dense_layer_forward.1} parent=11 // pred_check_branch
          %269 = sbr.rel (%p267) target = $region32
        $region31: #{dense_layer_forward.1} parent=11 // pred_region
          %271 = vsyncadd [#allocation9], 0
          %s272 = sshll.u32 %s5, 4
          %s273 = int_to_ptr.hbm [resolvable:$true] %s272
          %s274 = sshll.u32 [#allocation10], 4
          %s275 = int_to_ptr.vmem [resolvable:$true] %s274
          %280 = dma.hbm_to_vmem [thread:$0]  %s273, 256, %s275, [#allocation9], 128, 128, 8
        $region32: #{dense_layer_forward.1} parent=11 // pred_fallthru
          _
        // Predicated region
        $region33: #{dense_layer_forward.1} parent=11 // pred_check
          %p281 = pneg %p183
        $region34: #{dense_layer_forward.1} parent=11 // pred_check_branch
          %283 = sbr.rel (%p281) target = $region36
        $region35: #{dense_layer_forward.1} parent=11 // pred_region
          %285 = vsyncadd [#allocation12], 0
          %s286 = sshll.u32 %s6, 4
          %s287 = int_to_ptr.hbm [resolvable:$true] %s286
          %s288 = sshll.u32 [#allocation11], 4
          %s289 = int_to_ptr.vmem [resolvable:$true] %s288
          %294 = dma.hbm_to_vmem [thread:$0]  %s287, 1024, %s289, [#allocation12], 64, 64, 4
        $region36: #{dense_layer_forward.1} parent=11 // pred_fallthru
          _
      $region12: #{dense_layer_forward.1} parent=5 // pred_fallthru
        _
      %p295 = scmp.lt.s32.totalorder %s19, 4
      // Predicated region
      $region37: #{dense_layer_forward.1} parent=5 // pred_check
        %p296 = pneg %p295
      $region38: #{dense_layer_forward.1} parent=5 // pred_check_branch
        %298 = sbr.rel (%p296) target = $region40
      $region39: #{dense_layer_forward.1} parent=5 // pred_region
        // Predicated region
        $region41: #{dense_layer_forward.1} parent=39 // pred_check
          %p299 = pneg %p51
        $region42: #{dense_layer_forward.1} parent=39 // pred_check_branch
          %301 = sbr.rel (%p299) target = $region44
        $region43: #{dense_layer_forward.1} parent=39 // pred_region
          %s302 = sand.u32 %s41, 1
          %s303 = scalar_lea.sflag [#allocation4], %s302
          %s304 = sand.u32 %s41, 1
          %s305 = smul.addr %s304, 256
          %s306 = scalar_lea.vmem [#allocation3], %s305
          %308 = vsyncadd %s303, 0
          %s309 = smul.addr %s26, 32
          %s310 = smul.addr %s309, 8
          %s311 = scalar_lea.hbm %s0, %s310
          %s312 = sshll.u32 %s311, 4
          %s313 = int_to_ptr.hbm [resolvable:$true] %s312
          %s314 = sshll.u32 %s306, 4
          %s315 = int_to_ptr.vmem [resolvable:$true] %s314
          %320 = dma.hbm_to_vmem [thread:$0]  %s313, 4096, %s315, %s303, 128, 128, 8
        $region44: #{dense_layer_forward.1} parent=39 // pred_fallthru
          _
      $region40: #{dense_layer_forward.1} parent=5 // pred_fallthru
        _
      %p321 = scmp.le.s32.totalorder 1, %s19
      %p322 = scmp.lt.s32.totalorder %s19, 5
      %p323 = pnand %p321, %p322
      %p324 = pneg %p323
      // Predicated region
      $region45: #{dense_layer_forward.1} parent=5 // pred_check
        _
      $region46: #{dense_layer_forward.1} parent=5 // pred_check_branch
        %326 = sbr.rel (%p323) target = $region48
      $region47: #{dense_layer_forward.1} parent=5 // pred_region
        %s327 = ssub.s32 %s19, 1
        %s328 = sand.u32 %s44, 1
        %s329 = scalar_lea.sflag [#allocation4], %s328
        %s330 = sand.u32 %s44, 1
        %s331 = smul.addr %s330, 256
        %s332 = scalar_lea.vmem [#allocation3], %s331
        // Predicated region
        $region49: #{dense_layer_forward.1} parent=47 // pred_check
          %p333 = pneg %p57
        $region50: #{dense_layer_forward.1} parent=47 // pred_check_branch
          %335 = sbr.rel (%p333) target = $region52
        $region51: #{dense_layer_forward.1} parent=47 // pred_region
          %337 = dma.done %s329, 4096
        $region52: #{dense_layer_forward.1} parent=47 // pred_fallthru
          _
        // Predicated region
        $region53: #{dense_layer_forward.1} parent=47 // pred_check
          %p338 = pneg %p78
        $region54: #{dense_layer_forward.1} parent=47 // pred_check_branch
          %340 = sbr.rel (%p338) target = $region56
        $region55: #{dense_layer_forward.1} parent=47 // pred_region
          %342 = dma.done [#allocation6], 16
        $region56: #{dense_layer_forward.1} parent=47 // pred_fallthru
          _
        // Predicated region
        $region57: #{dense_layer_forward.1} parent=47 // pred_check
          %p343 = pneg %p99
        $region58: #{dense_layer_forward.1} parent=47 // pred_check_branch
          %345 = sbr.rel (%p343) target = $region60
        $region59: #{dense_layer_forward.1} parent=47 // pred_region
          %347 = dma.done [#allocation6], 16
        $region60: #{dense_layer_forward.1} parent=47 // pred_fallthru
          _
        // Predicated region
        $region61: #{dense_layer_forward.1} parent=47 // pred_check
          %p348 = pneg %p120
        $region62: #{dense_layer_forward.1} parent=47 // pred_check_branch
          %350 = sbr.rel (%p348) target = $region64
        $region63: #{dense_layer_forward.1} parent=47 // pred_region
          %352 = dma.done [#allocation9], 192
        $region64: #{dense_layer_forward.1} parent=47 // pred_fallthru
          _
        // Predicated region
        $region65: #{dense_layer_forward.1} parent=47 // pred_check
          %p353 = pneg %p162
        $region66: #{dense_layer_forward.1} parent=47 // pred_check_branch
          %355 = sbr.rel (%p353) target = $region68
        $region67: #{dense_layer_forward.1} parent=47 // pred_region
          %357 = dma.done [#allocation9], 256
        $region68: #{dense_layer_forward.1} parent=47 // pred_fallthru
          _
        // Predicated region
        $region69: #{dense_layer_forward.1} parent=47 // pred_check
          %p358 = pneg %p183
        $region70: #{dense_layer_forward.1} parent=47 // pred_check_branch
          %360 = sbr.rel (%p358) target = $region72
        $region71: #{dense_layer_forward.1} parent=47 // pred_region
          %362 = dma.done [#allocation12], 1024
        $region72: #{dense_layer_forward.1} parent=47 // pred_fallthru
          _
        %s363 = sand.u32 %s44, 1
        %s364 = scalar_lea.sflag [#allocation4], %s363
        %s365 = sand.u32 %s44, 1
        %s366 = smul.addr %s365, 256
        %s367 = scalar_lea.vmem [#allocation3], %s366
        %p368 = pneg %p57
        %p369 = pneg %p54
        %p370 = pneg %p78
        %p371 = pneg %p75
        %p372 = pneg %p99
        %p373 = pneg %p96
        %p374 = pneg %p120
        %p375 = pneg %p117
        %p376 = pneg %p141
        %p377 = pneg %p138
        %p378 = pneg %p162
        %p379 = pneg %p159
        %p380 = pneg %p183
        %p381 = pneg %p180
        %p382 = pneg %p211
        %p383 = pneg %p208
        %s384 = smul.u32 8, %s29
        %p385 = scmp.lt.s32.totalorder %s28, 1
        %s386 = scalar_select %p385, %s28, 1
        %p387 = scmp.lt.s32.totalorder %s384, 15
        %s388 = scalar_select %p387, %s384, 15
        %s389 = smul.addr %s388, 2
        %s390 = smul.addr %s386, 32
        %s391 = sadd.s32 %s389, %s390
        %s392 = smul.addr %s391, 8
        %s393 = scalar_lea.vmem %s7, %s392
        %s394 = smul.u32 8, %s29
        %p395 = scmp.lt.s32.totalorder %s28, 1
        %s396 = scalar_select %p395, %s28, 1
        %p397 = scmp.lt.s32.totalorder %s394, 15
        %s398 = scalar_select %p397, %s394, 15
        %s399 = smul.addr %s398, 2
        %s400 = smul.addr %s396, 32
        %s401 = sadd.s32 %s399, %s400
        %s402 = smul.addr %s401, 8
        %s403 = scalar_lea.vmem %s7, %s402
        %s404 = smul.u32 8, %s29
        %406 = vst [vmem:[#allocation2] sm:$0xff] 0.0
        %407 = vst [vmem:[#allocation2 + $0x8] sm:$0xff] 0.0
        %408 = vst [vmem:[#allocation2 + $0x10] sm:$0x3] 0.0
        %409 = vst [vmem:[#allocation2 + $0x18] sm:$0xff] 0.0
        %410 = vst [vmem:[#allocation2 + $0x20] sm:$0xff] 0.0
        %411 = vst [vmem:[#allocation2 + $0x28] sm:$0x3] 0.0
        %412 = vst [vmem:[#allocation2 + $0x30] sm:$0xff] 0.0
        %413 = vst [vmem:[#allocation2 + $0x38] sm:$0xff] 0.0
        %414 = vst [vmem:[#allocation2 + $0x40] sm:$0x3] 0.0
        %415 = vst [vmem:[#allocation2 + $0x48] sm:$0xff] 0.0
        %416 = vst [vmem:[#allocation2 + $0x50] sm:$0xff] 0.0
        %417 = vst [vmem:[#allocation2 + $0x58] sm:$0x3] 0.0
        %418 = vst [vmem:[#allocation2 + $0x60] sm:$0xff] 0.0
        %419 = vst [vmem:[#allocation2 + $0x68] sm:$0xff] 0.0
        %420 = vst [vmem:[#allocation2 + $0x70] sm:$0x3] 0.0
        %421 = vst [vmem:[#allocation2 + $0x78] sm:$0xff] 0.0
        %422 = vst [vmem:[#allocation2 + $0x80] sm:$0xff] 0.0
        %423 = vst [vmem:[#allocation2 + $0x88] sm:$0x3] 0.0
        %424 = vst [vmem:[#allocation2 + $0x90] sm:$0xff] 0.0
        %425 = vst [vmem:[#allocation2 + $0x98] sm:$0xff] 0.0
        %426 = vst [vmem:[#allocation2 + $0xa0] sm:$0x3] 0.0
        %427 = vst [vmem:[#allocation2 + $0xa8] sm:$0xff] 0.0
        %428 = vst [vmem:[#allocation2 + $0xb0] sm:$0xff] 0.0
        %429 = vst [vmem:[#allocation2 + $0xb8] sm:$0x3] 0.0
        %430 = vst [vmem:[#allocation2 + $0xc0] sm:$0xff] 0.0
        %431 = vst [vmem:[#allocation2 + $0xc8] sm:$0xff] 0.0
        %432 = vst [vmem:[#allocation2 + $0xd0] sm:$0x3] 0.0
        %433 = vst [vmem:[#allocation2 + $0xd8] sm:$0xff] 0.0
        %434 = vst [vmem:[#allocation2 + $0xe0] sm:$0xff] 0.0
        %435 = vst [vmem:[#allocation2 + $0xe8] sm:$0x3] 0.0
        %v436 = vld [vmem:[#allocation5] sm:$0x1]
        %v437 = vld [vmem:[#allocation7] sm:$0x1]
        %v438 = vld [vmem:[#allocation8] sm:$0xf]
        %v439 = vld [vmem:[#allocation8 + $0x4] sm:$0xf]
        %v440 = vld [vmem:[#allocation8 + $0x8] sm:$0xf]
        %v441 = vld [vmem:[%s4] sm:$0x1]
        %p442 = scmp.eq.s32.totalorder %s29, 0
        // Predicated region
        $region73: #{dense_layer_forward.1} parent=47 // pred_check
          %p443 = pneg %p442
        $region74: #{dense_layer_forward.1} parent=47 // pred_check_branch
          %445 = sbr.rel (%p443) target = $region76
        $region75: #{dense_layer_forward.1} parent=47 // pred_region
          %v446 = vld [vmem:[%s332] sm:$0xff]
          %v447 = vld [vmem:[%s332 + $0x8] sm:$0xff]
          %v448 = vld [vmem:[%s332 + $0x10] sm:$0xff]
          %v449 = vld [vmem:[%s332 + $0x18] sm:$0xff]
          %v450 = vld [vmem:[%s332 + $0x20] sm:$0xff]
          %v451 = vld [vmem:[%s332 + $0x28] sm:$0xff]
          %v452 = vld [vmem:[%s332 + $0x30] sm:$0xff]
          %v453 = vld [vmem:[%s332 + $0x38] sm:$0xff]
          %v454 = vld [vmem:[%s332 + $0x40] sm:$0xff]
          %v455 = vld [vmem:[%s332 + $0x48] sm:$0xff]
          %v456 = vld [vmem:[%s332 + $0x50] sm:$0xff]
          %v457 = vld [vmem:[%s332 + $0x58] sm:$0xff]
          %v458 = vld [vmem:[%s332 + $0x60] sm:$0xff]
          %v459 = vld [vmem:[%s332 + $0x68] sm:$0xff]
          %v460 = vld [vmem:[%s332 + $0x70] sm:$0xff]
          %v461 = vld [vmem:[%s332 + $0x78] sm:$0xff]
          %v462 = vld [vmem:[%s332 + $0x80] sm:$0xff]
          %v463 = vld [vmem:[%s332 + $0x88] sm:$0xff]
          %v465 = vperm.slane %v436, 0
          %v467 = vmul.f32 %v446, %v465
          %v468 = vmul.f32 %v447, %v465
          %v469 = vmul.f32 %v448, %v465
          %v470 = vmul.f32 %v449, %v465
          %v471 = vmul.f32 %v450, %v465
          %v472 = vmul.f32 %v451, %v465
          %v473 = vmul.f32 %v452, %v465
          %v474 = vmul.f32 %v453, %v465
          %v475 = vmul.f32 %v454, %v465
          %v476 = vmul.f32 %v455, %v465
          %v477 = vmul.f32 %v456, %v465
          %v478 = vmul.f32 %v457, %v465
          %v479 = vmul.f32 %v458, %v465
          %v480 = vmul.f32 %v459, %v465
          %v481 = vmul.f32 %v460, %v465
          %v482 = vmul.f32 %v461, %v465
          %v483 = vmul.f32 %v462, %v465
          %v484 = vmul.f32 %v463, %v465
          %v486 = vperm.slane %v437, 0
          %v488 = vadd.f32 %v467, %v486
          %v489 = vadd.f32 %v468, %v486
          %v490 = vadd.f32 %v469, %v486
          %v491 = vadd.f32 %v470, %v486
          %v492 = vadd.f32 %v471, %v486
          %v493 = vadd.f32 %v472, %v486
          %v494 = vadd.f32 %v473, %v486
          %v495 = vadd.f32 %v474, %v486
          %v496 = vadd.f32 %v475, %v486
          %v497 = vadd.f32 %v476, %v486
          %v498 = vadd.f32 %v477, %v486
          %v499 = vadd.f32 %v478, %v486
          %v500 = vadd.f32 %v479, %v486
          %v501 = vadd.f32 %v480, %v486
          %v502 = vadd.f32 %v481, %v486
          %v503 = vadd.f32 %v482, %v486
          %v504 = vadd.f32 %v483, %v486
          %v505 = vadd.f32 %v484, %v486
          %v506 = vmax.f32 %v488, 0.0
          %v507 = vmax.f32 %v489, 0.0
          %v508 = vmax.f32 %v490, 0.0
          %v509 = vmax.f32 %v491, 0.0
          %v510 = vmax.f32 %v492, 0.0
          %v511 = vmax.f32 %v493, 0.0
          %v512 = vmax.f32 %v494, 0.0
          %v513 = vmax.f32 %v495, 0.0
          %v514 = vmax.f32 %v496, 0.0
          %v515 = vmax.f32 %v497, 0.0
          %v516 = vmax.f32 %v498, 0.0
          %v517 = vmax.f32 %v499, 0.0
          %v518 = vmax.f32 %v500, 0.0
          %v519 = vmax.f32 %v501, 0.0
          %v520 = vmax.f32 %v502, 0.0
          %v521 = vmax.f32 %v503, 0.0
          %v522 = vmax.f32 %v504, 0.0
          %v523 = vmax.f32 %v505, 0.0
          %v524 = vpack.c.bf16 %v507, %v506
          %v525 = vpack.c.bf16 %v509, %v508
          %v526 = vpack.c.bf16 %v511, %v510
          %v527 = vpack.c.bf16 %v513, %v512
          %v528 = vpack.c.bf16 %v515, %v514
          %v529 = vpack.c.bf16 %v517, %v516
          %v530 = vpack.c.bf16 %v519, %v518
          %v531 = vpack.c.bf16 %v521, %v520
          %v532 = vpack.c.bf16 %v523, %v522
          %v534 = vperm.slane %v441, 0
          %v539 = vunpack.c.l.b16 %v438
          %v540 = vunpack.c.l.b16 %v439
          %v541 = vunpack.c.l.b16 %v440
          %v542 = vpack.c.b16 %v540, %v539
          %v543 = vpack.c.b16 %v541, %v541
          %vm545 = vcmask 195584
          %v547 = vsel %vm545, %v524, 0
          %v550 = vsel %vm545, %v525, 0
          %v553 = vsel %vm545, %v526, 0
          %v556 = vsel %vm545, %v527, 0
          %v559 = vsel %vm545, %v528, 0
          %v562 = vsel %vm545, %v529, 0
          %v565 = vsel %vm545, %v530, 0
          %v568 = vsel %vm545, %v531, 0
          %v571 = vsel %vm545, %v532, 0
          %vm573 = vcmask 1043456
          %v575 = vsel %vm573, %v543, 0
          %577 = vmatpush.bf16.msra.mxu0 0
          %578 = vmatpush.bf16.msra.mxu0 0
          %579 = vmatpush.bf16.msra.mxu0 0
          %580 = vmatpush.bf16.msra.mxu0 0
          %581 = vmatpush.bf16.msra.mxu0 0
          %582 = vmatpush.bf16.msra.mxu0 0
          %583 = vmatpush.bf16.msra.mxu0 %v575
          %584 = vmatpush.bf16.msra.mxu0 %v542
          %585 = vmatmul.bf16.gmra.mxu0 %v547
          %v586 = vpop.f32.mrf.mxu0
          %v587 = vadd.f32 %v534, %v586
          %v588 = vpop.f32.mrf.mxu0
          %v589 = vadd.f32 %v534, %v588
          %590 = vmatmul.bf16.gmra.mxu0 %v550
          %v591 = vpop.f32.mrf.mxu0
          %v592 = vadd.f32 %v534, %v591
          %v593 = vpop.f32.mrf.mxu0
          %v594 = vadd.f32 %v534, %v593
          %595 = vmatmul.bf16.gmra.mxu0 %v553
          %v596 = vpop.f32.mrf.mxu0
          %v597 = vadd.f32 %v534, %v596
          %v598 = vpop.f32.mrf.mxu0
          %v599 = vadd.f32 %v534, %v598
          %600 = vmatmul.bf16.gmra.mxu0 %v556
          %v601 = vpop.f32.mrf.mxu0
          %v602 = vadd.f32 %v534, %v601
          %v603 = vpop.f32.mrf.mxu0
          %v604 = vadd.f32 %v534, %v603
          %605 = vmatmul.bf16.gmra.mxu0 %v559
          %v606 = vpop.f32.mrf.mxu0
          %v607 = vadd.f32 %v534, %v606
          %v608 = vpop.f32.mrf.mxu0
          %v609 = vadd.f32 %v534, %v608
          %610 = vmatmul.bf16.gmra.mxu0 %v562
          %v611 = vpop.f32.mrf.mxu0
          %v612 = vadd.f32 %v534, %v611
          %v613 = vpop.f32.mrf.mxu0
          %v614 = vadd.f32 %v534, %v613
          %615 = vmatmul.bf16.gmra.mxu0 %v565
          %v616 = vpop.f32.mrf.mxu0
          %v617 = vadd.f32 %v534, %v616
          %v618 = vpop.f32.mrf.mxu0
          %v619 = vadd.f32 %v534, %v618
          %620 = vmatmul.bf16.gmra.mxu0 %v568
          %v621 = vpop.f32.mrf.mxu0
          %v622 = vadd.f32 %v534, %v621
          %v623 = vpop.f32.mrf.mxu0
          %v624 = vadd.f32 %v534, %v623
          %625 = vmatmul.bf16.gmra.mxu0 %v571
          %v626 = vpop.f32.mrf.mxu0
          %v627 = vadd.f32 %v534, %v626
          %v628 = vpop.f32.mrf.mxu0
          %v629 = vadd.f32 %v534, %v628
          %630 = vdwg.mxu0
          %v631 = vmax.f32 %v587, 0.0
          %v632 = vmax.f32 %v589, 0.0
          %v633 = vmax.f32 %v592, 0.0
          %v634 = vmax.f32 %v594, 0.0
          %v635 = vmax.f32 %v597, 0.0
          %v636 = vmax.f32 %v599, 0.0
          %v637 = vmax.f32 %v602, 0.0
          %v638 = vmax.f32 %v604, 0.0
          %v639 = vmax.f32 %v607, 0.0
          %v640 = vmax.f32 %v609, 0.0
          %v641 = vmax.f32 %v612, 0.0
          %v642 = vmax.f32 %v614, 0.0
          %v643 = vmax.f32 %v617, 0.0
          %v644 = vmax.f32 %v619, 0.0
          %v645 = vmax.f32 %v622, 0.0
          %v646 = vmax.f32 %v624, 0.0
          %v647 = vmax.f32 %v627, 0.0
          %v648 = vmax.f32 %v629, 0.0
          %s649 = scalar_lea.vmem [#allocation2], 24
          %650 = vst [vmem:[%s649 + $0x1] sm:$0xff] %v631
          %651 = vst [vmem:[%s649 + $0x9] sm:$0xff] %v632
          %652 = vst [vmem:[%s649 + $0x19] sm:$0xff] %v633
          %653 = vst [vmem:[%s649 + $0x21] sm:$0xff] %v634
          %654 = vst [vmem:[%s649 + $0x31] sm:$0xff] %v635
          %655 = vst [vmem:[%s649 + $0x39] sm:$0xff] %v636
          %656 = vst [vmem:[%s649 + $0x49] sm:$0xff] %v637
          %657 = vst [vmem:[%s649 + $0x51] sm:$0xff] %v638
          %658 = vst [vmem:[%s649 + $0x61] sm:$0xff] %v639
          %659 = vst [vmem:[%s649 + $0x69] sm:$0xff] %v640
          %660 = vst [vmem:[%s649 + $0x79] sm:$0xff] %v641
          %661 = vst [vmem:[%s649 + $0x81] sm:$0xff] %v642
          %662 = vst [vmem:[%s649 + $0x91] sm:$0xff] %v643
          %663 = vst [vmem:[%s649 + $0x99] sm:$0xff] %v644
          %664 = vst [vmem:[%s649 + $0xa9] sm:$0xff] %v645
          %665 = vst [vmem:[%s649 + $0xb1] sm:$0xff] %v646
          %666 = vst [vmem:[%s649 + $0xc1] sm:$0xff] %v647
          %667 = vst [vmem:[%s649 + $0xc9] sm:$0xff] %v648
        $region76: #{dense_layer_forward.1} parent=47 // pred_fallthru
          _
        %p668 = scmp.eq.s32.totalorder %s29, 1
        // Predicated region
        $region77: #{dense_layer_forward.1} parent=47 // pred_check
          %p669 = pneg %p668
        $region78: #{dense_layer_forward.1} parent=47 // pred_check_branch
          %671 = sbr.rel (%p669) target = $region80
        $region79: #{dense_layer_forward.1} parent=47 // pred_region
          %s672 = scalar_lea.vmem %s332, 112 [#allocation3]
          %v673 = vld [vmem:[%s672] sm:$0xff]
          %v674 = vld [vmem:[%s672 + $0x8] sm:$0xff]
          %v675 = vld [vmem:[%s672 + $0x10] sm:$0xff]
          %v676 = vld [vmem:[%s672 + $0x18] sm:$0xff]
          %v677 = vld [vmem:[%s672 + $0x20] sm:$0xff]
          %v678 = vld [vmem:[%s672 + $0x28] sm:$0xff]
          %v679 = vld [vmem:[%s672 + $0x30] sm:$0xff]
          %v680 = vld [vmem:[%s672 + $0x38] sm:$0xff]
          %v681 = vld [vmem:[%s672 + $0x40] sm:$0xff]
          %v682 = vld [vmem:[%s672 + $0x48] sm:$0xff]
          %v683 = vld [vmem:[%s672 + $0x50] sm:$0xff]
          %v684 = vld [vmem:[%s672 + $0x58] sm:$0xff]
          %v685 = vld [vmem:[%s672 + $0x60] sm:$0xff]
          %v686 = vld [vmem:[%s672 + $0x68] sm:$0xff]
          %v687 = vld [vmem:[%s672 + $0x70] sm:$0xff]
          %v688 = vld [vmem:[%s672 + $0x78] sm:$0xff]
          %v689 = vld [vmem:[%s672 + $0x80] sm:$0xff]
          %v690 = vld [vmem:[%s672 + $0x88] sm:$0xff]
          %v692 = vperm.slane %v436, 0
          %v694 = vmul.f32 %v673, %v692
          %v695 = vmul.f32 %v674, %v692
          %v696 = vmul.f32 %v675, %v692
          %v697 = vmul.f32 %v676, %v692
          %v698 = vmul.f32 %v677, %v692
          %v699 = vmul.f32 %v678, %v692
          %v700 = vmul.f32 %v679, %v692
          %v701 = vmul.f32 %v680, %v692
          %v702 = vmul.f32 %v681, %v692
          %v703 = vmul.f32 %v682, %v692
          %v704 = vmul.f32 %v683, %v692
          %v705 = vmul.f32 %v684, %v692
          %v706 = vmul.f32 %v685, %v692
          %v707 = vmul.f32 %v686, %v692
          %v708 = vmul.f32 %v687, %v692
          %v709 = vmul.f32 %v688, %v692
          %v710 = vmul.f32 %v689, %v692
          %v711 = vmul.f32 %v690, %v692
          %v713 = vperm.slane %v437, 0
          %v715 = vadd.f32 %v694, %v713
          %v716 = vadd.f32 %v695, %v713
          %v717 = vadd.f32 %v696, %v713
          %v718 = vadd.f32 %v697, %v713
          %v719 = vadd.f32 %v698, %v713
          %v720 = vadd.f32 %v699, %v713
          %v721 = vadd.f32 %v700, %v713
          %v722 = vadd.f32 %v701, %v713
          %v723 = vadd.f32 %v702, %v713
          %v724 = vadd.f32 %v703, %v713
          %v725 = vadd.f32 %v704, %v713
          %v726 = vadd.f32 %v705, %v713
          %v727 = vadd.f32 %v706, %v713
          %v728 = vadd.f32 %v707, %v713
          %v729 = vadd.f32 %v708, %v713
          %v730 = vadd.f32 %v709, %v713
          %v731 = vadd.f32 %v710, %v713
          %v732 = vadd.f32 %v711, %v713
          %v733 = vmax.f32 %v715, 0.0
          %v734 = vmax.f32 %v716, 0.0
          %v735 = vmax.f32 %v717, 0.0
          %v736 = vmax.f32 %v718, 0.0
          %v737 = vmax.f32 %v719, 0.0
          %v738 = vmax.f32 %v720, 0.0
          %v739 = vmax.f32 %v721, 0.0
          %v740 = vmax.f32 %v722, 0.0
          %v741 = vmax.f32 %v723, 0.0
          %v742 = vmax.f32 %v724, 0.0
          %v743 = vmax.f32 %v725, 0.0
          %v744 = vmax.f32 %v726, 0.0
          %v745 = vmax.f32 %v727, 0.0
          %v746 = vmax.f32 %v728, 0.0
          %v747 = vmax.f32 %v729, 0.0
          %v748 = vmax.f32 %v730, 0.0
          %v749 = vmax.f32 %v731, 0.0
          %v750 = vmax.f32 %v732, 0.0
          %v751 = vpack.c.bf16 %v734, %v733
          %v752 = vpack.c.bf16 %v736, %v735
          %v753 = vpack.c.bf16 %v738, %v737
          %v754 = vpack.c.bf16 %v740, %v739
          %v755 = vpack.c.bf16 %v742, %v741
          %v756 = vpack.c.bf16 %v744, %v743
          %v757 = vpack.c.bf16 %v746, %v745
          %v758 = vpack.c.bf16 %v748, %v747
          %v759 = vpack.c.bf16 %v750, %v749
          %v761 = vperm.slane %v441, 0
          %v766 = vunpack.c.l.b16 %v438
          %v767 = vunpack.c.l.b16 %v439
          %v768 = vunpack.c.l.b16 %v440
          %v769 = vpack.c.b16 %v767, %v766
          %v770 = vpack.c.b16 %v768, %v768
          %vm772 = vcmask 195584
          %v774 = vsel %vm772, %v751, 0
          %v777 = vsel %vm772, %v752, 0
          %v780 = vsel %vm772, %v753, 0
          %v783 = vsel %vm772, %v754, 0
          %v786 = vsel %vm772, %v755, 0
          %v789 = vsel %vm772, %v756, 0
          %v792 = vsel %vm772, %v757, 0
          %v795 = vsel %vm772, %v758, 0
          %v798 = vsel %vm772, %v759, 0
          %vm800 = vcmask 1043456
          %v802 = vsel %vm800, %v770, 0
          %804 = vmatpush.bf16.msra.mxu0 0
          %805 = vmatpush.bf16.msra.mxu0 0
          %806 = vmatpush.bf16.msra.mxu0 0
          %807 = vmatpush.bf16.msra.mxu0 0
          %808 = vmatpush.bf16.msra.mxu0 0
          %809 = vmatpush.bf16.msra.mxu0 0
          %810 = vmatpush.bf16.msra.mxu0 %v802
          %811 = vmatpush.bf16.msra.mxu0 %v769
          %812 = vmatmul.bf16.gmra.mxu0 %v774
          %v813 = vpop.f32.mrf.mxu0
          %v814 = vadd.f32 %v761, %v813
          %v815 = vpop.f32.mrf.mxu0
          %v816 = vadd.f32 %v761, %v815
          %817 = vmatmul.bf16.gmra.mxu0 %v777
          %v818 = vpop.f32.mrf.mxu0
          %v819 = vadd.f32 %v761, %v818
          %v820 = vpop.f32.mrf.mxu0
          %v821 = vadd.f32 %v761, %v820
          %822 = vmatmul.bf16.gmra.mxu0 %v780
          %v823 = vpop.f32.mrf.mxu0
          %v824 = vadd.f32 %v761, %v823
          %v825 = vpop.f32.mrf.mxu0
          %v826 = vadd.f32 %v761, %v825
          %827 = vmatmul.bf16.gmra.mxu0 %v783
          %v828 = vpop.f32.mrf.mxu0
          %v829 = vadd.f32 %v761, %v828
          %v830 = vpop.f32.mrf.mxu0
          %v831 = vadd.f32 %v761, %v830
          %832 = vmatmul.bf16.gmra.mxu0 %v786
          %v833 = vpop.f32.mrf.mxu0
          %v834 = vadd.f32 %v761, %v833
          %v835 = vpop.f32.mrf.mxu0
          %v836 = vadd.f32 %v761, %v835
          %837 = vmatmul.bf16.gmra.mxu0 %v789
          %v838 = vpop.f32.mrf.mxu0
          %v839 = vadd.f32 %v761, %v838
          %v840 = vpop.f32.mrf.mxu0
          %v841 = vadd.f32 %v761, %v840
          %842 = vmatmul.bf16.gmra.mxu0 %v792
          %v843 = vpop.f32.mrf.mxu0
          %v844 = vadd.f32 %v761, %v843
          %v845 = vpop.f32.mrf.mxu0
          %v846 = vadd.f32 %v761, %v845
          %847 = vmatmul.bf16.gmra.mxu0 %v795
          %v848 = vpop.f32.mrf.mxu0
          %v849 = vadd.f32 %v761, %v848
          %v850 = vpop.f32.mrf.mxu0
          %v851 = vadd.f32 %v761, %v850
          %852 = vmatmul.bf16.gmra.mxu0 %v798
          %v853 = vpop.f32.mrf.mxu0
          %v854 = vadd.f32 %v761, %v853
          %v855 = vpop.f32.mrf.mxu0
          %v856 = vadd.f32 %v761, %v855
          %857 = vdwg.mxu0
          %v858 = vmax.f32 %v814, 0.0
          %v859 = vmax.f32 %v816, 0.0
          %v860 = vmax.f32 %v819, 0.0
          %v861 = vmax.f32 %v821, 0.0
          %v862 = vmax.f32 %v824, 0.0
          %v863 = vmax.f32 %v826, 0.0
          %v864 = vmax.f32 %v829, 0.0
          %v865 = vmax.f32 %v831, 0.0
          %v866 = vmax.f32 %v834, 0.0
          %v867 = vmax.f32 %v836, 0.0
          %v868 = vmax.f32 %v839, 0.0
          %v869 = vmax.f32 %v841, 0.0
          %v870 = vmax.f32 %v844, 0.0
          %v871 = vmax.f32 %v846, 0.0
          %v872 = vmax.f32 %v849, 0.0
          %v873 = vmax.f32 %v851, 0.0
          %v874 = vmax.f32 %v854, 0.0
          %v875 = vmax.f32 %v856, 0.0
          %876 = vst [vmem:[#allocation2 + $0x1] sm:$0xff] %v858
          %877 = vst [vmem:[#allocation2 + $0x9] sm:$0xff] %v859
          %878 = vst [vmem:[#allocation2 + $0x19] sm:$0xff] %v860
          %879 = vst [vmem:[#allocation2 + $0x21] sm:$0xff] %v861
          %880 = vst [vmem:[#allocation2 + $0x31] sm:$0xff] %v862
          %881 = vst [vmem:[#allocation2 + $0x39] sm:$0xff] %v863
          %882 = vst [vmem:[#allocation2 + $0x49] sm:$0xff] %v864
          %883 = vst [vmem:[#allocation2 + $0x51] sm:$0xff] %v865
          %884 = vst [vmem:[#allocation2 + $0x61] sm:$0xff] %v866
          %885 = vst [vmem:[#allocation2 + $0x69] sm:$0xff] %v867
          %886 = vst [vmem:[#allocation2 + $0x79] sm:$0xff] %v868
          %887 = vst [vmem:[#allocation2 + $0x81] sm:$0xff] %v869
          %888 = vst [vmem:[#allocation2 + $0x91] sm:$0xff] %v870
          %889 = vst [vmem:[#allocation2 + $0x99] sm:$0xff] %v871
          %890 = vst [vmem:[#allocation2 + $0xa9] sm:$0xff] %v872
          %891 = vst [vmem:[#allocation2 + $0xb1] sm:$0xff] %v873
          %892 = vst [vmem:[#allocation2 + $0xc1] sm:$0xff] %v874
          %893 = vst [vmem:[#allocation2 + $0xc9] sm:$0xff] %v875
        $region80: #{dense_layer_forward.1} parent=47 // pred_fallthru
          _
        %v894 = vld [vmem:[#allocation10] sm:$0xff]
        %v895 = vld [vmem:[#allocation10 + $0x8] sm:$0x1]
        %v896 = vld [vmem:[#allocation2] sm:$0xff]
        %v897 = vld [vmem:[#allocation2 + $0x8] sm:$0xff]
        %v898 = vld [vmem:[#allocation2 + $0x18] sm:$0xff]
        %v899 = vld [vmem:[#allocation2 + $0x20] sm:$0xff]
        %v900 = vld [vmem:[#allocation2 + $0x30] sm:$0xff]
        %v901 = vld [vmem:[#allocation2 + $0x38] sm:$0xff]
        %v902 = vld [vmem:[#allocation2 + $0x48] sm:$0xff]
        %v903 = vld [vmem:[#allocation2 + $0x50] sm:$0xff]
        %v904 = vld [vmem:[#allocation2 + $0x60] sm:$0xff]
        %v905 = vld [vmem:[#allocation2 + $0x68] sm:$0xff]
        %v906 = vld [vmem:[#allocation2 + $0x78] sm:$0xff]
        %v907 = vld [vmem:[#allocation2 + $0x80] sm:$0xff]
        %v908 = vld [vmem:[#allocation2 + $0x90] sm:$0xff]
        %v909 = vld [vmem:[#allocation2 + $0x98] sm:$0xff]
        %v910 = vld [vmem:[#allocation2 + $0xa8] sm:$0xff]
        %v911 = vld [vmem:[#allocation2 + $0xb0] sm:$0xff]
        %v912 = vld [vmem:[#allocation2 + $0xc0] sm:$0xff]
        %v913 = vld [vmem:[#allocation2 + $0xc8] sm:$0xff]
        %v914 = vld [vmem:[#allocation2 + $0xd8] sm:$0xff]
        %v915 = vld [vmem:[#allocation2 + $0xe0] sm:$0xff]
        %v916 = vperm.slane %v894, 0
        %v917 = vmul.f32 %v896, %v916
        %v918 = vmul.f32 %v897, %v916
        %v919 = vmul.f32 %v898, %v916
        %v920 = vmul.f32 %v899, %v916
        %v921 = vmul.f32 %v900, %v916
        %v922 = vmul.f32 %v901, %v916
        %v923 = vmul.f32 %v902, %v916
        %v924 = vmul.f32 %v903, %v916
        %v925 = vmul.f32 %v904, %v916
        %v926 = vmul.f32 %v905, %v916
        %v927 = vmul.f32 %v906, %v916
        %v928 = vmul.f32 %v907, %v916
        %v929 = vmul.f32 %v908, %v916
        %v930 = vmul.f32 %v909, %v916
        %v931 = vmul.f32 %v910, %v916
        %v932 = vmul.f32 %v911, %v916
        %v933 = vadd.f32 %v917, 0.0
        %v934 = vadd.f32 %v918, 0.0
        %v935 = vadd.f32 %v919, 0.0
        %v936 = vadd.f32 %v920, 0.0
        %v937 = vadd.f32 %v921, 0.0
        %v938 = vadd.f32 %v922, 0.0
        %v939 = vadd.f32 %v923, 0.0
        %v940 = vadd.f32 %v924, 0.0
        %v941 = vadd.f32 %v925, 0.0
        %v942 = vadd.f32 %v926, 0.0
        %v943 = vadd.f32 %v927, 0.0
        %v944 = vadd.f32 %v928, 0.0
        %v945 = vadd.f32 %v929, 0.0
        %v946 = vadd.f32 %v930, 0.0
        %v947 = vadd.f32 %v931, 0.0
        %v948 = vadd.f32 %v932, 0.0
        %v949 = vperm.slane %v894, 3
        %v950 = vmul.f32 %v898, %v949
        %v951 = vmul.f32 %v899, %v949
        %v952 = vmul.f32 %v900, %v949
        %v953 = vmul.f32 %v901, %v949
        %v954 = vmul.f32 %v902, %v949
        %v955 = vmul.f32 %v903, %v949
        %v956 = vmul.f32 %v904, %v949
        %v957 = vmul.f32 %v905, %v949
        %v958 = vmul.f32 %v906, %v949
        %v959 = vmul.f32 %v907, %v949
        %v960 = vmul.f32 %v908, %v949
        %v961 = vmul.f32 %v909, %v949
        %v962 = vmul.f32 %v910, %v949
        %v963 = vmul.f32 %v911, %v949
        %v964 = vmul.f32 %v912, %v949
        %v965 = vmul.f32 %v913, %v949
        %v966 = vadd.f32 %v933, %v950
        %v967 = vadd.f32 %v934, %v951
        %v968 = vadd.f32 %v935, %v952
        %v969 = vadd.f32 %v936, %v953
        %v970 = vadd.f32 %v937, %v954
        %v971 = vadd.f32 %v938, %v955
        %v972 = vadd.f32 %v939, %v956
        %v973 = vadd.f32 %v940, %v957
        %v974 = vadd.f32 %v941, %v958
        %v975 = vadd.f32 %v942, %v959
        %v976 = vadd.f32 %v943, %v960
        %v977 = vadd.f32 %v944, %v961
        %v978 = vadd.f32 %v945, %v962
        %v979 = vadd.f32 %v946, %v963
        %v980 = vadd.f32 %v947, %v964
        %v981 = vadd.f32 %v948, %v965
        %v982 = vperm.slane %v894, 6
        %v983 = vmul.f32 %v900, %v982
        %v984 = vmul.f32 %v901, %v982
        %v985 = vmul.f32 %v902, %v982
        %v986 = vmul.f32 %v903, %v982
        %v987 = vmul.f32 %v904, %v982
        %v988 = vmul.f32 %v905, %v982
        %v989 = vmul.f32 %v906, %v982
        %v990 = vmul.f32 %v907, %v982
        %v991 = vmul.f32 %v908, %v982
        %v992 = vmul.f32 %v909, %v982
        %v993 = vmul.f32 %v910, %v982
        %v994 = vmul.f32 %v911, %v982
        %v995 = vmul.f32 %v912, %v982
        %v996 = vmul.f32 %v913, %v982
        %v997 = vmul.f32 %v914, %v982
        %v998 = vmul.f32 %v915, %v982
        %v999 = vadd.f32 %v966, %v983
        %v1000 = vadd.f32 %v967, %v984
        %v1001 = vadd.f32 %v968, %v985
        %v1002 = vadd.f32 %v969, %v986
        %v1003 = vadd.f32 %v970, %v987
        %v1004 = vadd.f32 %v971, %v988
        %v1005 = vadd.f32 %v972, %v989
        %v1006 = vadd.f32 %v973, %v990
        %v1007 = vadd.f32 %v974, %v991
        %v1008 = vadd.f32 %v975, %v992
        %v1009 = vadd.f32 %v976, %v993
        %v1010 = vadd.f32 %v977, %v994
        %v1011 = vadd.f32 %v978, %v995
        %v1012 = vadd.f32 %v979, %v996
        %v1013 = vadd.f32 %v980, %v997
        %v1014 = vadd.f32 %v981, %v998
        %v1015 = vld [vmem:[#allocation2 + $0x1] sm:$0xff]
        %v1016 = vld [vmem:[#allocation2 + $0x9] sm:$0xff]
        %v1017 = vld [vmem:[#allocation2 + $0x19] sm:$0xff]
        %v1018 = vld [vmem:[#allocation2 + $0x21] sm:$0xff]
        %v1019 = vld [vmem:[#allocation2 + $0x31] sm:$0xff]
        %v1020 = vld [vmem:[#allocation2 + $0x39] sm:$0xff]
        %v1021 = vld [vmem:[#allocation2 + $0x49] sm:$0xff]
        %v1022 = vld [vmem:[#allocation2 + $0x51] sm:$0xff]
        %v1023 = vld [vmem:[#allocation2 + $0x61] sm:$0xff]
        %v1024 = vld [vmem:[#allocation2 + $0x69] sm:$0xff]
        %v1025 = vld [vmem:[#allocation2 + $0x79] sm:$0xff]
        %v1026 = vld [vmem:[#allocation2 + $0x81] sm:$0xff]
        %v1027 = vld [vmem:[#allocation2 + $0x91] sm:$0xff]
        %v1028 = vld [vmem:[#allocation2 + $0x99] sm:$0xff]
        %v1029 = vld [vmem:[#allocation2 + $0xa9] sm:$0xff]
        %v1030 = vld [vmem:[#allocation2 + $0xb1] sm:$0xff]
        %v1031 = vld [vmem:[#allocation2 + $0xc1] sm:$0xff]
        %v1032 = vld [vmem:[#allocation2 + $0xc9] sm:$0xff]
        %v1033 = vld [vmem:[#allocation2 + $0xd9] sm:$0xff]
        %v1034 = vld [vmem:[#allocation2 + $0xe1] sm:$0xff]
        %v1035 = vperm.slane %v894, 1
        %v1036 = vmul.f32 %v1015, %v1035
        %v1037 = vmul.f32 %v1016, %v1035
        %v1038 = vmul.f32 %v1017, %v1035
        %v1039 = vmul.f32 %v1018, %v1035
        %v1040 = vmul.f32 %v1019, %v1035
        %v1041 = vmul.f32 %v1020, %v1035
        %v1042 = vmul.f32 %v1021, %v1035
        %v1043 = vmul.f32 %v1022, %v1035
        %v1044 = vmul.f32 %v1023, %v1035
        %v1045 = vmul.f32 %v1024, %v1035
        %v1046 = vmul.f32 %v1025, %v1035
        %v1047 = vmul.f32 %v1026, %v1035
        %v1048 = vmul.f32 %v1027, %v1035
        %v1049 = vmul.f32 %v1028, %v1035
        %v1050 = vmul.f32 %v1029, %v1035
        %v1051 = vmul.f32 %v1030, %v1035
        %v1052 = vadd.f32 %v999, %v1036
        %v1053 = vadd.f32 %v1000, %v1037
        %v1054 = vadd.f32 %v1001, %v1038
        %v1055 = vadd.f32 %v1002, %v1039
        %v1056 = vadd.f32 %v1003, %v1040
        %v1057 = vadd.f32 %v1004, %v1041
        %v1058 = vadd.f32 %v1005, %v1042
        %v1059 = vadd.f32 %v1006, %v1043
        %v1060 = vadd.f32 %v1007, %v1044
        %v1061 = vadd.f32 %v1008, %v1045
        %v1062 = vadd.f32 %v1009, %v1046
        %v1063 = vadd.f32 %v1010, %v1047
        %v1064 = vadd.f32 %v1011, %v1048
        %v1065 = vadd.f32 %v1012, %v1049
        %v1066 = vadd.f32 %v1013, %v1050
        %v1067 = vadd.f32 %v1014, %v1051
        %v1068 = vperm.slane %v894, 4
        %v1069 = vmul.f32 %v1017, %v1068
        %v1070 = vmul.f32 %v1018, %v1068
        %v1071 = vmul.f32 %v1019, %v1068
        %v1072 = vmul.f32 %v1020, %v1068
        %v1073 = vmul.f32 %v1021, %v1068
        %v1074 = vmul.f32 %v1022, %v1068
        %v1075 = vmul.f32 %v1023, %v1068
        %v1076 = vmul.f32 %v1024, %v1068
        %v1077 = vmul.f32 %v1025, %v1068
        %v1078 = vmul.f32 %v1026, %v1068
        %v1079 = vmul.f32 %v1027, %v1068
        %v1080 = vmul.f32 %v1028, %v1068
        %v1081 = vmul.f32 %v1029, %v1068
        %v1082 = vmul.f32 %v1030, %v1068
        %v1083 = vmul.f32 %v1031, %v1068
        %v1084 = vmul.f32 %v1032, %v1068
        %v1085 = vadd.f32 %v1052, %v1069
        %v1086 = vadd.f32 %v1053, %v1070
        %v1087 = vadd.f32 %v1054, %v1071
        %v1088 = vadd.f32 %v1055, %v1072
        %v1089 = vadd.f32 %v1056, %v1073
        %v1090 = vadd.f32 %v1057, %v1074
        %v1091 = vadd.f32 %v1058, %v1075
        %v1092 = vadd.f32 %v1059, %v1076
        %v1093 = vadd.f32 %v1060, %v1077
        %v1094 = vadd.f32 %v1061, %v1078
        %v1095 = vadd.f32 %v1062, %v1079
        %v1096 = vadd.f32 %v1063, %v1080
        %v1097 = vadd.f32 %v1064, %v1081
        %v1098 = vadd.f32 %v1065, %v1082
        %v1099 = vadd.f32 %v1066, %v1083
        %v1100 = vadd.f32 %v1067, %v1084
        %v1101 = vperm.slane %v894, 7
        %v1102 = vmul.f32 %v1019, %v1101
        %v1103 = vmul.f32 %v1020, %v1101
        %v1104 = vmul.f32 %v1021, %v1101
        %v1105 = vmul.f32 %v1022, %v1101
        %v1106 = vmul.f32 %v1023, %v1101
        %v1107 = vmul.f32 %v1024, %v1101
        %v1108 = vmul.f32 %v1025, %v1101
        %v1109 = vmul.f32 %v1026, %v1101
        %v1110 = vmul.f32 %v1027, %v1101
        %v1111 = vmul.f32 %v1028, %v1101
        %v1112 = vmul.f32 %v1029, %v1101
        %v1113 = vmul.f32 %v1030, %v1101
        %v1114 = vmul.f32 %v1031, %v1101
        %v1115 = vmul.f32 %v1032, %v1101
        %v1116 = vmul.f32 %v1033, %v1101
        %v1117 = vmul.f32 %v1034, %v1101
        %v1118 = vadd.f32 %v1085, %v1102
        %v1119 = vadd.f32 %v1086, %v1103
        %v1120 = vadd.f32 %v1087, %v1104
        %v1121 = vadd.f32 %v1088, %v1105
        %v1122 = vadd.f32 %v1089, %v1106
        %v1123 = vadd.f32 %v1090, %v1107
        %v1124 = vadd.f32 %v1091, %v1108
        %v1125 = vadd.f32 %v1092, %v1109
        %v1126 = vadd.f32 %v1093, %v1110
        %v1127 = vadd.f32 %v1094, %v1111
        %v1128 = vadd.f32 %v1095, %v1112
        %v1129 = vadd.f32 %v1096, %v1113
        %v1130 = vadd.f32 %v1097, %v1114
        %v1131 = vadd.f32 %v1098, %v1115
        %v1132 = vadd.f32 %v1099, %v1116
        %v1133 = vadd.f32 %v1100, %v1117
        %v1134 = vld [vmem:[#allocation2 + $0x2] sm:$0xff]
        %v1135 = vld [vmem:[#allocation2 + $0xa] sm:$0xff]
        %v1136 = vld [vmem:[#allocation2 + $0x1a] sm:$0xff]
        %v1137 = vld [vmem:[#allocation2 + $0x22] sm:$0xff]
        %v1138 = vld [vmem:[#allocation2 + $0x32] sm:$0xff]
        %v1139 = vld [vmem:[#allocation2 + $0x3a] sm:$0xff]
        %v1140 = vld [vmem:[#allocation2 + $0x4a] sm:$0xff]
        %v1141 = vld [vmem:[#allocation2 + $0x52] sm:$0xff]
        %v1142 = vld [vmem:[#allocation2 + $0x62] sm:$0xff]
        %v1143 = vld [vmem:[#allocation2 + $0x6a] sm:$0xff]
        %v1144 = vld [vmem:[#allocation2 + $0x7a] sm:$0xff]
        %v1145 = vld [vmem:[#allocation2 + $0x82] sm:$0xff]
        %v1146 = vld [vmem:[#allocation2 + $0x92] sm:$0xff]
        %v1147 = vld [vmem:[#allocation2 + $0x9a] sm:$0xff]
        %v1148 = vld [vmem:[#allocation2 + $0xaa] sm:$0xff]
        %v1149 = vld [vmem:[#allocation2 + $0xb2] sm:$0xff]
        %v1150 = vld [vmem:[#allocation2 + $0xc2] sm:$0xff]
        %v1151 = vld [vmem:[#allocation2 + $0xca] sm:$0xff]
        %v1152 = vld [vmem:[#allocation2 + $0xda] sm:$0xff]
        %v1153 = vld [vmem:[#allocation2 + $0xe2] sm:$0xff]
        %v1154 = vperm.slane %v894, 2
        %v1155 = vmul.f32 %v1134, %v1154
        %v1156 = vmul.f32 %v1135, %v1154
        %v1157 = vmul.f32 %v1136, %v1154
        %v1158 = vmul.f32 %v1137, %v1154
        %v1159 = vmul.f32 %v1138, %v1154
        %v1160 = vmul.f32 %v1139, %v1154
        %v1161 = vmul.f32 %v1140, %v1154
        %v1162 = vmul.f32 %v1141, %v1154
        %v1163 = vmul.f32 %v1142, %v1154
        %v1164 = vmul.f32 %v1143, %v1154
        %v1165 = vmul.f32 %v1144, %v1154
        %v1166 = vmul.f32 %v1145, %v1154
        %v1167 = vmul.f32 %v1146, %v1154
        %v1168 = vmul.f32 %v1147, %v1154
        %v1169 = vmul.f32 %v1148, %v1154
        %v1170 = vmul.f32 %v1149, %v1154
        %v1171 = vadd.f32 %v1118, %v1155
        %v1172 = vadd.f32 %v1119, %v1156
        %v1173 = vadd.f32 %v1120, %v1157
        %v1174 = vadd.f32 %v1121, %v1158
        %v1175 = vadd.f32 %v1122, %v1159
        %v1176 = vadd.f32 %v1123, %v1160
        %v1177 = vadd.f32 %v1124, %v1161
        %v1178 = vadd.f32 %v1125, %v1162
        %v1179 = vadd.f32 %v1126, %v1163
        %v1180 = vadd.f32 %v1127, %v1164
        %v1181 = vadd.f32 %v1128, %v1165
        %v1182 = vadd.f32 %v1129, %v1166
        %v1183 = vadd.f32 %v1130, %v1167
        %v1184 = vadd.f32 %v1131, %v1168
        %v1185 = vadd.f32 %v1132, %v1169
        %v1186 = vadd.f32 %v1133, %v1170
        %v1187 = vperm.slane %v894, 5
        %v1188 = vmul.f32 %v1136, %v1187
        %v1189 = vmul.f32 %v1137, %v1187
        %v1190 = vmul.f32 %v1138, %v1187
        %v1191 = vmul.f32 %v1139, %v1187
        %v1192 = vmul.f32 %v1140, %v1187
        %v1193 = vmul.f32 %v1141, %v1187
        %v1194 = vmul.f32 %v1142, %v1187
        %v1195 = vmul.f32 %v1143, %v1187
        %v1196 = vmul.f32 %v1144, %v1187
        %v1197 = vmul.f32 %v1145, %v1187
        %v1198 = vmul.f32 %v1146, %v1187
        %v1199 = vmul.f32 %v1147, %v1187
        %v1200 = vmul.f32 %v1148, %v1187
        %v1201 = vmul.f32 %v1149, %v1187
        %v1202 = vmul.f32 %v1150, %v1187
        %v1203 = vmul.f32 %v1151, %v1187
        %v1204 = vadd.f32 %v1171, %v1188
        %v1205 = vadd.f32 %v1172, %v1189
        %v1206 = vadd.f32 %v1173, %v1190
        %v1207 = vadd.f32 %v1174, %v1191
        %v1208 = vadd.f32 %v1175, %v1192
        %v1209 = vadd.f32 %v1176, %v1193
        %v1210 = vadd.f32 %v1177, %v1194
        %v1211 = vadd.f32 %v1178, %v1195
        %v1212 = vadd.f32 %v1179, %v1196
        %v1213 = vadd.f32 %v1180, %v1197
        %v1214 = vadd.f32 %v1181, %v1198
        %v1215 = vadd.f32 %v1182, %v1199
        %v1216 = vadd.f32 %v1183, %v1200
        %v1217 = vadd.f32 %v1184, %v1201
        %v1218 = vadd.f32 %v1185, %v1202
        %v1219 = vadd.f32 %v1186, %v1203
        %v1220 = vperm.slane %v895, 0
        %v1221 = vmul.f32 %v1138, %v1220
        %v1222 = vmul.f32 %v1139, %v1220
        %v1223 = vmul.f32 %v1140, %v1220
        %v1224 = vmul.f32 %v1141, %v1220
        %v1225 = vmul.f32 %v1142, %v1220
        %v1226 = vmul.f32 %v1143, %v1220
        %v1227 = vmul.f32 %v1144, %v1220
        %v1228 = vmul.f32 %v1145, %v1220
        %v1229 = vmul.f32 %v1146, %v1220
        %v1230 = vmul.f32 %v1147, %v1220
        %v1231 = vmul.f32 %v1148, %v1220
        %v1232 = vmul.f32 %v1149, %v1220
        %v1233 = vmul.f32 %v1150, %v1220
        %v1234 = vmul.f32 %v1151, %v1220
        %v1235 = vmul.f32 %v1152, %v1220
        %v1236 = vmul.f32 %v1153, %v1220
        %v1237 = vadd.f32 %v1204, %v1221
        %v1238 = vadd.f32 %v1205, %v1222
        %v1239 = vadd.f32 %v1206, %v1223
        %v1240 = vadd.f32 %v1207, %v1224
        %v1241 = vadd.f32 %v1208, %v1225
        %v1242 = vadd.f32 %v1209, %v1226
        %v1243 = vadd.f32 %v1210, %v1227
        %v1244 = vadd.f32 %v1211, %v1228
        %v1245 = vadd.f32 %v1212, %v1229
        %v1246 = vadd.f32 %v1213, %v1230
        %v1247 = vadd.f32 %v1214, %v1231
        %v1248 = vadd.f32 %v1215, %v1232
        %v1249 = vadd.f32 %v1216, %v1233
        %v1250 = vadd.f32 %v1217, %v1234
        %v1251 = vadd.f32 %v1218, %v1235
        %v1252 = vadd.f32 %v1219, %v1236
        %v1253 = vpack.c.bf16 %v1238, %v1237
        %v1254 = vpack.c.bf16 %v1240, %v1239
        %v1255 = vpack.c.bf16 %v1242, %v1241
        %v1256 = vpack.c.bf16 %v1244, %v1243
        %v1257 = vpack.c.bf16 %v1246, %v1245
        %v1258 = vpack.c.bf16 %v1248, %v1247
        %v1259 = vpack.c.bf16 %v1250, %v1249
        %v1260 = vpack.c.bf16 %v1252, %v1251
        %v1261 = vld [vmem:[#allocation11] sm:$0xf]
        %v1262 = vld [vmem:[#allocation11 + $0x4] sm:$0xf]
        %v1263 = vld [vmem:[#allocation11 + $0x8] sm:$0xf]
        %v1264 = vld [vmem:[#allocation11 + $0xc] sm:$0xf]
        %v1265 = vld [vmem:[#allocation11 + $0x10] sm:$0xf]
        %v1266 = vld [vmem:[#allocation11 + $0x14] sm:$0xf]
        %v1267 = vld [vmem:[#allocation11 + $0x18] sm:$0xf]
        %v1268 = vld [vmem:[#allocation11 + $0x1c] sm:$0xf]
        %v1269 = vld [vmem:[#allocation11 + $0x20] sm:$0xf]
        %v1270 = vld [vmem:[#allocation11 + $0x24] sm:$0xf]
        %v1271 = vld [vmem:[#allocation11 + $0x28] sm:$0xf]
        %v1272 = vld [vmem:[#allocation11 + $0x2c] sm:$0xf]
        %v1273 = vld [vmem:[#allocation11 + $0x30] sm:$0xf]
        %v1274 = vld [vmem:[#allocation11 + $0x34] sm:$0xf]
        %v1275 = vld [vmem:[#allocation11 + $0x38] sm:$0xf]
        %v1276 = vld [vmem:[#allocation11 + $0x3c] sm:$0xf]
        %v1293 = vunpack.c.l.b16 %v1261
        %v1294 = vunpack.c.l.b16 %v1262
        %v1295 = vunpack.c.l.b16 %v1263
        %v1296 = vunpack.c.l.b16 %v1264
        %v1297 = vunpack.c.l.b16 %v1265
        %v1298 = vunpack.c.l.b16 %v1266
        %v1299 = vunpack.c.l.b16 %v1267
        %v1300 = vunpack.c.l.b16 %v1268
        %v1301 = vunpack.c.l.b16 %v1269
        %v1302 = vunpack.c.l.b16 %v1270
        %v1303 = vunpack.c.l.b16 %v1271
        %v1304 = vunpack.c.l.b16 %v1272
        %v1305 = vunpack.c.l.b16 %v1273
        %v1306 = vunpack.c.l.b16 %v1274
        %v1307 = vunpack.c.l.b16 %v1275
        %v1308 = vunpack.c.l.b16 %v1276
        %v1309 = vpack.c.b16 %v1294, %v1293
        %v1310 = vpack.c.b16 %v1296, %v1295
        %v1311 = vpack.c.b16 %v1298, %v1297
        %v1312 = vpack.c.b16 %v1300, %v1299
        %v1313 = vpack.c.b16 %v1302, %v1301
        %v1314 = vpack.c.b16 %v1304, %v1303
        %v1315 = vpack.c.b16 %v1306, %v1305
        %v1316 = vpack.c.b16 %v1308, %v1307
        %1325 = vmatpush.bf16.msra.mxu0 %v1316
        %1326 = vmatpush.bf16.msra.mxu0 %v1315
        %1327 = vmatpush.bf16.msra.mxu0 %v1314
        %1328 = vmatpush.bf16.msra.mxu0 %v1313
        %1329 = vmatpush.bf16.msra.mxu0 %v1312
        %1330 = vmatpush.bf16.msra.mxu0 %v1311
        %1331 = vmatpush.bf16.msra.mxu0 %v1310
        %1332 = vmatpush.bf16.msra.mxu0 %v1309
        %1333 = vmatmul.bf16.gmra.mxu0 %v1253
        %v1334 = vpop.f32.mrf.mxu0
        %v1335 = vadd.f32 0.0, %v1334
        %v1336 = vpop.f32.mrf.mxu0
        %v1337 = vadd.f32 0.0, %v1336
        %1338 = vmatmul.bf16.gmra.mxu0 %v1254
        %v1339 = vpop.f32.mrf.mxu0
        %v1340 = vadd.f32 0.0, %v1339
        %v1341 = vpop.f32.mrf.mxu0
        %v1342 = vadd.f32 0.0, %v1341
        %1343 = vmatmul.bf16.gmra.mxu0 %v1255
        %v1344 = vpop.f32.mrf.mxu0
        %v1345 = vadd.f32 0.0, %v1344
        %v1346 = vpop.f32.mrf.mxu0
        %v1347 = vadd.f32 0.0, %v1346
        %1348 = vmatmul.bf16.gmra.mxu0 %v1256
        %v1349 = vpop.f32.mrf.mxu0
        %v1350 = vadd.f32 0.0, %v1349
        %v1351 = vpop.f32.mrf.mxu0
        %v1352 = vadd.f32 0.0, %v1351
        %1353 = vmatmul.bf16.gmra.mxu0 %v1257
        %v1354 = vpop.f32.mrf.mxu0
        %v1355 = vadd.f32 0.0, %v1354
        %v1356 = vpop.f32.mrf.mxu0
        %v1357 = vadd.f32 0.0, %v1356
        %1358 = vmatmul.bf16.gmra.mxu0 %v1258
        %v1359 = vpop.f32.mrf.mxu0
        %v1360 = vadd.f32 0.0, %v1359
        %v1361 = vpop.f32.mrf.mxu0
        %v1362 = vadd.f32 0.0, %v1361
        %1363 = vmatmul.bf16.gmra.mxu0 %v1259
        %v1364 = vpop.f32.mrf.mxu0
        %v1365 = vadd.f32 0.0, %v1364
        %v1366 = vpop.f32.mrf.mxu0
        %v1367 = vadd.f32 0.0, %v1366
        %1368 = vmatmul.bf16.gmra.mxu0 %v1260
        %v1369 = vpop.f32.mrf.mxu0
        %v1370 = vadd.f32 0.0, %v1369
        %v1371 = vpop.f32.mrf.mxu0
        %v1372 = vadd.f32 0.0, %v1371
        %1373 = vdwg.mxu0
        %vm1374 = vcmask 64512
        %1375 = vst.msk [vmem:[%s403] sm:$0xff] %vm1374, %v1335
        %1376 = vst.msk [vmem:[%s403 + $0x8] sm:$0xff] %vm1374, %v1337
        %1377 = vst.msk [vmem:[%s403 + $0x10] sm:$0xff] %vm1374, %v1340
        %1378 = vst.msk [vmem:[%s403 + $0x18] sm:$0xff] %vm1374, %v1342
        %1379 = vst.msk [vmem:[%s403 + $0x20] sm:$0xff] %vm1374, %v1345
        %1380 = vst.msk [vmem:[%s403 + $0x28] sm:$0xff] %vm1374, %v1347
        %1381 = vst.msk [vmem:[%s403 + $0x30] sm:$0xff] %vm1374, %v1350
        %1382 = vst.msk [vmem:[%s403 + $0x38] sm:$0xff] %vm1374, %v1352
        %1383 = vst.msk [vmem:[%s403 + $0x40] sm:$0xff] %vm1374, %v1355
        %1384 = vst.msk [vmem:[%s403 + $0x48] sm:$0xff] %vm1374, %v1357
        %1385 = vst.msk [vmem:[%s403 + $0x50] sm:$0xff] %vm1374, %v1360
        %1386 = vst.msk [vmem:[%s403 + $0x58] sm:$0xff] %vm1374, %v1362
        %1387 = vst.msk [vmem:[%s403 + $0x60] sm:$0xff] %vm1374, %v1365
        %1388 = vst.msk [vmem:[%s403 + $0x68] sm:$0xff] %vm1374, %v1367
        %1389 = vst.msk [vmem:[%s403 + $0x70] sm:$0xff] %vm1374, %v1370
        %1390 = vst.msk [vmem:[%s403 + $0x78] sm:$0xff] %vm1374, %v1372
        %s1391 = smul.u32 8, %s29
        %p1392 = scmp.lt.s32.totalorder %s28, 1
        %s1393 = scalar_select %p1392, %s28, 1
        %p1394 = scmp.lt.s32.totalorder %s1391, 15
        %s1395 = scalar_select %p1394, %s1391, 15
        %s1396 = smul.addr %s1395, 2
        %s1397 = smul.addr %s1393, 32
        %s1398 = sadd.s32 %s1396, %s1397
        %s1399 = smul.addr %s1398, 8
        %s1400 = scalar_lea.vmem %s7, %s1399
        // Predicated region
        $region81: #{dense_layer_forward.1} parent=47 // pred_check
          %p1401 = pneg %p208
        $region82: #{dense_layer_forward.1} parent=47 // pred_check_branch
          %1403 = sbr.rel (%p1401) target = $region84
        $region83: #{dense_layer_forward.1} parent=47 // pred_region
          %s1404 = smul.u32 8, %s29
        $region84: #{dense_layer_forward.1} parent=47 // pred_fallthru
          _
      $region48: #{dense_layer_forward.1} parent=5 // pred_fallthru
        _
      %p1405 = scmp.le.s32.totalorder 2, %s19
      // Predicated region
      $region85: #{dense_layer_forward.1} parent=5 // pred_check
        %p1406 = pneg %p1405
      $region86: #{dense_layer_forward.1} parent=5 // pred_check_branch
        %1408 = sbr.rel (%p1406) target = $region88
      $region87: #{dense_layer_forward.1} parent=5 // pred_region
        %s1409 = ssub.s32 %s19, 2
        // Predicated region
        $region89: #{dense_layer_forward.1} parent=87 // pred_check
          %p1410 = pneg %p214
        $region90: #{dense_layer_forward.1} parent=87 // pred_check_branch
          %1412 = sbr.rel (%p1410) target = $region92
        $region91: #{dense_layer_forward.1} parent=87 // pred_region
          %s1413 = smul.u32 8, %s31
          %p1414 = scmp.lt.s32.totalorder %s30, 1
          %s1415 = scalar_select %p1414, %s30, 1
          %p1416 = scmp.lt.s32.totalorder %s1413, 15
          %s1417 = scalar_select %p1416, %s1413, 15
          %s1418 = smul.addr %s1417, 2
          %s1419 = smul.addr %s1415, 32
          %s1420 = sadd.s32 %s1418, %s1419
          %s1421 = smul.addr %s1420, 8
          %s1422 = scalar_lea.vmem %s7, %s1421
        $region92: #{dense_layer_forward.1} parent=87 // pred_fallthru
          _
      $region88: #{dense_layer_forward.1} parent=5 // pred_fallthru
        _
    $region6: #{dense_layer_forward.1} parent=1 // loop_footer
      %s23 = sadd.s32 1, %s19
    $region7: #{dense_layer_forward.1} parent=1 // loop_footer_branch
      %18 = sbr.rel target = $region3
    $region8: #{dense_layer_forward.1} parent=1 // loop_exit
      _
    %1423 = vsyncpa [#allocation4], 1
    %s1424 = scalar_lea.sflag [#allocation4], 1
    %1425 = vsyncpa %s1424, 1
    %1426 = vsyncpa [#allocation6], 1
    %1427 = vsyncpa [#allocation9], 1
    %1428 = vsyncpa [#allocation12], 1

</llo_original>
